<compile_context>
chip_gen: v7x
topology: tpu7x:2x2x1
jax: 0.10.0
libtpu: 0.0.40
codegen_flags: <defaults>
</compile_context>

<pallas_src>
import jax
import jax.numpy as jnp
from jax import lax
from jax.experimental import pallas as pl
from jax.experimental.pallas import tpu as pltpu


def _sublane_multiple(itemsize):
    # Native second-minor tiling: 8 for 4-byte, 16 for 2-byte, 32 for 1-byte.
    return max(8, 32 // itemsize)


def _vmem_capacity_bytes():
    try:
        cap = int(pltpu.get_tpu_info().vmem_capacity_bytes)
        if cap > 0:
            return cap
    except Exception:
        pass
    return 64 * 1024 * 1024  # conservative fallback: v7x per-core VMEM


def _pick_rows_per_step(Ho, C, W, stride, itemsize, compute_itemsize, B,
                        vmem_budget_bytes, sublane):
    """Pick TH (output rows per grid step).

    VMEM footprint model per output row of work (per unit TH):
      2x double-buffered input block  : 2 * C*s*W*itemsize
      2x double-buffered output block : 2 * C*s*W*itemsize
      in-kernel temporaries (per-hi chunk in compute dtype, f32 matmul
      result, cast copy for the store) : ~ C*s*W*(itemsize + compute + 4)
    """
    s = stride
    per_row = C * s * W * (5 * itemsize + compute_itemsize + 4)
    max_th = max(1, vmem_budget_bytes // per_row)

    # Legal tiles: multiples of the sublane tile that divide Ho, or full Ho.
    cands = [th for th in range(sublane, Ho, sublane) if Ho % th == 0] + [Ho]
    fits = [th for th in cands if th <= max_th]
    if not fits:
        # Nothing fits the budget (awkward Ho): take the smallest legal tile;
        # the caller raises vmem_limit_bytes to cover it.
        fits = [min(cands)]

    # Prefer enough grid steps for software pipelining and (v7x) megacore.
    for min_steps in (4, 2):
        good = [th for th in fits if B * (Ho // th) >= min_steps]
        if good:
            return max(good), per_row
    return max(fits), per_row


def _make_reorg_kernel(stride, C, W, TH, compute_dtype, precision):
    s = stride
    Wo = W // s

    def kernel(sel_ref, x_ref, o_ref):
        # sel_ref: (W, s*Wo)  one-hot W-de-interleave selector (resident).
        # x_ref:   (1, C, TH, s*W)  -- row t packs input rows t*s .. t*s+s-1.
        # o_ref:   (1, s*s*C, TH, Wo)
        sel = sel_ref[...]
        for hi in range(s):
            # H de-interleave is pure data movement: input rows i*s + hi live
            # in the contiguous lane range [hi*W, (hi+1)*W) of the view.
            chunk = x_ref[0, :, :, hi * W:(hi + 1) * W]          # (C, TH, W)
            chunk = chunk.reshape(C * TH, W).astype(compute_dtype)
            # W de-interleave on the MXU: column wi*Wo + j picks w = j*s + wi.
            # TODO(synk): 0 * Inf/NaN in the one-hot matmul can leak NaN into
            # sibling outputs of the same row; a gather/strided-load path
            # would avoid this but is kept out for lowering robustness.
            acc = lax.dot_general(
                chunk, sel, (((1,), (0,)), ((), ())),
                precision=precision,
                preferred_element_type=jnp.float32)              # (C*TH, s*Wo)
            res = acc.reshape(C, TH, s * Wo)
            for wi in range(s):
                base = (hi * s + wi) * C
                o_ref[0, base:base + C, :, :] = (
                    res[:, :, wi * Wo:(wi + 1) * Wo].astype(o_ref.dtype))

    return kernel


def reorg(x, stride=2):
    """YOLO Reorg: (B, C, H, W) -> (B, stride*stride*C, H//stride, W//stride)."""
    assert x.ndim == 4
    B, C, H, W = x.shape
    s = int(stride)
    assert H % s == 0 and W % s == 0
    if s == 1:
        return x
    Ho, Wo = H // s, W // s
    Cout = s * s * C

    dt = jnp.dtype(x.dtype)
    if dt == jnp.dtype(jnp.bfloat16):
        compute_dtype, precision = jnp.bfloat16, lax.Precision.DEFAULT
    elif dt in (jnp.dtype(jnp.float32), jnp.dtype(jnp.float16)):
        # One-hot x f32 must run HIGHEST to be an exact pass-through.
        compute_dtype, precision = jnp.float32, lax.Precision.HIGHEST
    else:
        # TODO(synk): integer / f64 / fp8 inputs need a non-MXU (gather or
        # strided-load) de-interleave path; fall back to pure JAX for now.
        return reorg_reference(x, stride=s)

    itemsize = dt.itemsize
    citemsize = jnp.dtype(compute_dtype).itemsize
    sublane = _sublane_multiple(itemsize)

    vmem_cap = _vmem_capacity_bytes()
    TH, per_row = _pick_rows_per_step(
        Ho, C, W, s, itemsize, citemsize, B,
        vmem_budget_bytes=vmem_cap // 2, sublane=sublane)
    assert Ho % TH == 0
    grid = (B, Ho // TH)

    # One-hot selector: column wi*Wo + j selects input lane j*s + wi.
    col = jnp.arange(s * Wo, dtype=jnp.int32)
    src = (col % Wo) * s + (col // Wo)
    sel = (jnp.arange(W, dtype=jnp.int32)[:, None] == src[None, :]).astype(compute_dtype)
    sel_bytes = W * s * Wo * citemsize

    # Free metadata view: row i packs input rows i*s .. i*s + s-1 along lanes.
    x_view = x.reshape(B, C, Ho, s * W)

    need = int(per_row * TH * 1.25) + 2 * sel_bytes + (2 << 20)
    vmem_limit = max(need, min(int(vmem_cap * 0.75), 100 << 20))
    vmem_limit = min(vmem_limit, max(vmem_cap - (8 << 20), 32 << 20))
    vmem_limit = max(vmem_limit, 16 << 20)

    kernel = _make_reorg_kernel(s, C, W, TH, compute_dtype, precision)
    return pl.pallas_call(
        kernel,
        out_shape=jax.ShapeDtypeStruct((B, Cout, Ho, Wo), x.dtype),
        grid_spec=pltpu.PrefetchScalarGridSpec(
            num_scalar_prefetch=0,
            grid=grid,
            in_specs=[
                # Selector: constant block index => stays resident in VMEM.
                pl.BlockSpec((W, s * Wo), lambda b, it: (0, 0)),
                pl.BlockSpec((1, C, TH, s * W), lambda b, it: (b, 0, it, 0)),
            ],
            out_specs=pl.BlockSpec((1, Cout, TH, Wo),
                                   lambda b, it: (b, 0, it, 0)),
        ),
        compiler_params=pltpu.CompilerParams(
            dimension_semantics=("parallel", "parallel"),
            vmem_limit_bytes=int(vmem_limit),
        ),
        cost_estimate=pl.CostEstimate(
            flops=2 * W * B * C * H * W,     # s selector matmuls / step, K = W
            transcendentals=0,
            bytes_accessed=2 * B * C * H * W * itemsize + sel_bytes,
        ),
    )(sel, x_view)


def reorg_reference(x, stride=2):
    """Pure-JAX transcription of the PyTorch forward, for verification."""
    B, C, H, W = x.shape
    hs = ws = stride
    x = x.reshape(B, C, H // hs, hs, W // ws, ws)
    x = jnp.transpose(x, (0, 1, 2, 4, 3, 5))           # .transpose(3, 4)
    x = x.reshape(B, C, (H // hs) * (W // ws), hs * ws)
    x = jnp.transpose(x, (0, 1, 3, 2))                 # .transpose(2, 3)
    x = x.reshape(B, C, hs * ws, H // hs, W // ws)
    x = jnp.transpose(x, (0, 2, 1, 3, 4))              # .transpose(1, 2)
    return x.reshape(B, hs * ws * C, H // hs, W // ws)


if __name__ == "__main__":
    key = jax.random.PRNGKey(0)
    k1, k2, k3, k4 = jax.random.split(key, 4)

    # 1) Primary case: f32, stride 2.
    x = jax.random.normal(k1, (2, 4, 16, 16), dtype=jnp.float32)
    out = jax.block_until_ready(reorg(x, stride=2))
    ref = reorg_reference(x, stride=2)
    assert out.shape == (2, 16, 8, 8), out.shape
    assert bool(jnp.array_equal(out, ref)), "f32 stride-2 mismatch"

    # 2) Multi-row-tile grid (TH < Ho), non-square image, f32.
    x2 = jax.random.normal(k2, (1, 2, 48, 32), dtype=jnp.float32)
    out2 = jax.block_until_ready(reorg(x2, stride=2))
    assert bool(jnp.array_equal(out2, reorg_reference(x2, stride=2))), \
        "f32 tiled mismatch"

    # 3) bf16 path (native MXU, no f32 upcast).
    x3 = jax.random.normal(k3, (2, 2, 32, 32), dtype=jnp.bfloat16)
    out3 = jax.block_until_ready(reorg(x3, stride=2))
    assert bool(jnp.array_equal(out3, reorg_reference(x3, stride=2))), \
        "bf16 mismatch"

    # 4) General stride.
    x4 = jax.random.normal(k4, (2, 3, 16, 16), dtype=jnp.float32)
    out4 = jax.block_until_ready(reorg(x4, stride=4))
    assert bool(jnp.array_equal(out4, reorg_reference(x4, stride=4))), \
        "stride-4 mismatch"

    print("KERNEL_OK")
</pallas_src>

<mosaic_0001>
module attributes {stable_mosaic.version = 11 : i64} {
  func.func @kernel(%arg0: i32, %arg1: i32, %arg2: memref<16x16xf32, #tpu.memory_space<vmem>>, %arg3: memref<1x4x8x32xf32, #tpu.memory_space<vmem>>, %arg4: memref<1x16x8x8xf32, #tpu.memory_space<vmem>>) attributes {dimension_semantics = [#tpu.dimension_semantics<parallel>, #tpu.dimension_semantics<parallel>], iteration_bounds = array<i64: 2, 1>, scalar_prefetch = 0 : i64, scratch_operands = 0 : i64, tpu.core_type = #tpu.core_type<tc>, window_params = [{pipeline_mode = #tpu.pipeline_mode<synchronous>, transform_indices = @transform_0, window_bounds = array<i64: 16, 16>}, {transform_indices = @transform_1, window_bounds = array<i64: 1, 4, 8, 32>}, {transform_indices = @transform_2, window_bounds = array<i64: 1, 16, 8, 8>}]} {
    %c0 = arith.constant 0 : index
    %c0_0 = arith.constant 0 : index
    %0 = vector.load %arg2[%c0, %c0_0] : memref<16x16xf32, #tpu.memory_space<vmem>>, vector<16x16xf32>
    %c0_1 = arith.constant 0 : index
    %c0_2 = arith.constant 0 : index
    %c0_3 = arith.constant 0 : index
    %c0_4 = arith.constant 0 : index
    %1 = vector.load %arg3[%c0_1, %c0_2, %c0_3, %c0_4] : memref<1x4x8x32xf32, #tpu.memory_space<vmem>>, vector<1x4x8x16xf32>
    %2 = vector.shape_cast %1 : vector<1x4x8x16xf32> to vector<4x8x16xf32>
    %3 = vector.shape_cast %2 : vector<4x8x16xf32> to vector<32x16xf32>
    %cst = arith.constant dense<0.000000e+00> : vector<32x16xf32>
    %4 = tpu.matmul %3, %0, %cst {dimension_numbers = #tpu.dot_dimension_numbers<[1], [0], [0], [1], [0, 0, 1, 1], [], []>, precision = #tpu.contract_precision<fp32>} : vector<32x16xf32>, vector<16x16xf32>, vector<32x16xf32> -> vector<32x16xf32>
    %5 = vector.shape_cast %4 : vector<32x16xf32> to vector<4x8x16xf32>
    %6 = vector.extract_strided_slice %5 {offsets = [0, 0, 0], sizes = [4, 8, 8], strides = [1, 1, 1]} : vector<4x8x16xf32> to vector<4x8x8xf32>
    %c0_5 = arith.constant 0 : index
    %c0_6 = arith.constant 0 : index
    %c0_7 = arith.constant 0 : index
    %c0_8 = arith.constant 0 : index
    %7 = vector.load %arg4[%c0_5, %c0_6, %c0_7, %c0_8] : memref<1x16x8x8xf32, #tpu.memory_space<vmem>>, vector<1x4x8x8xf32>
    %8 = vector.shape_cast %7 : vector<1x4x8x8xf32> to vector<4x8x8xf32>
    %9 = vector.shape_cast %6 : vector<4x8x8xf32> to vector<1x4x8x8xf32>
    tpu.vector_store %arg4[%c0_5, %c0_6, %c0_7, %c0_8], %9 {strides = array<i32>} : memref<1x16x8x8xf32, #tpu.memory_space<vmem>>, vector<1x4x8x8xf32>,
    %10 = vector.extract_strided_slice %5 {offsets = [0, 0, 8], sizes = [4, 8, 8], strides = [1, 1, 1]} : vector<4x8x16xf32> to vector<4x8x8xf32>
    %c0_9 = arith.constant 0 : index
    %c4 = arith.constant 4 : index
    %c0_10 = arith.constant 0 : index
    %c0_11 = arith.constant 0 : index
    %11 = vector.load %arg4[%c0_9, %c4, %c0_10, %c0_11] : memref<1x16x8x8xf32, #tpu.memory_space<vmem>>, vector<1x4x8x8xf32>
    %12 = vector.shape_cast %11 : vector<1x4x8x8xf32> to vector<4x8x8xf32>
    %13 = vector.shape_cast %10 : vector<4x8x8xf32> to vector<1x4x8x8xf32>
    tpu.vector_store %arg4[%c0_9, %c4, %c0_10, %c0_11], %13 {strides = array<i32>} : memref<1x16x8x8xf32, #tpu.memory_space<vmem>>, vector<1x4x8x8xf32>,
    %c0_12 = arith.constant 0 : index
    %c0_13 = arith.constant 0 : index
    %c0_14 = arith.constant 0 : index
    %c16 = arith.constant 16 : index
    %14 = vector.load %arg3[%c0_12, %c0_13, %c0_14, %c16] : memref<1x4x8x32xf32, #tpu.memory_space<vmem>>, vector<1x4x8x16xf32>
    %15 = vector.shape_cast %14 : vector<1x4x8x16xf32> to vector<4x8x16xf32>
    %16 = vector.shape_cast %15 : vector<4x8x16xf32> to vector<32x16xf32>
    %cst_15 = arith.constant dense<0.000000e+00> : vector<32x16xf32>
    %17 = tpu.matmul %16, %0, %cst_15 {dimension_numbers = #tpu.dot_dimension_numbers<[1], [0], [0], [1], [0, 0, 1, 1], [], []>, precision = #tpu.contract_precision<fp32>} : vector<32x16xf32>, vector<16x16xf32>, vector<32x16xf32> -> vector<32x16xf32>
    %18 = vector.shape_cast %17 : vector<32x16xf32> to vector<4x8x16xf32>
    %19 = vector.extract_strided_slice %18 {offsets = [0, 0, 0], sizes = [4, 8, 8], strides = [1, 1, 1]} : vector<4x8x16xf32> to vector<4x8x8xf32>
    %c0_16 = arith.constant 0 : index
    %c8 = arith.constant 8 : index
    %c0_17 = arith.constant 0 : index
    %c0_18 = arith.constant 0 : index
    %20 = vector.load %arg4[%c0_16, %c8, %c0_17, %c0_18] : memref<1x16x8x8xf32, #tpu.memory_space<vmem>>, vector<1x4x8x8xf32>
    %21 = vector.shape_cast %20 : vector<1x4x8x8xf32> to vector<4x8x8xf32>
    %22 = vector.shape_cast %19 : vector<4x8x8xf32> to vector<1x4x8x8xf32>
    tpu.vector_store %arg4[%c0_16, %c8, %c0_17, %c0_18], %22 {strides = array<i32>} : memref<1x16x8x8xf32, #tpu.memory_space<vmem>>, vector<1x4x8x8xf32>,
    %23 = vector.extract_strided_slice %18 {offsets = [0, 0, 8], sizes = [4, 8, 8], strides = [1, 1, 1]} : vector<4x8x16xf32> to vector<4x8x8xf32>
    %c0_19 = arith.constant 0 : index
    %c12 = arith.constant 12 : index
    %c0_20 = arith.constant 0 : index
    %c0_21 = arith.constant 0 : index
    %24 = vector.load %arg4[%c0_19, %c12, %c0_20, %c0_21] : memref<1x16x8x8xf32, #tpu.memory_space<vmem>>, vector<1x4x8x8xf32>
    %25 = vector.shape_cast %24 : vector<1x4x8x8xf32> to vector<4x8x8xf32>
    %26 = vector.shape_cast %23 : vector<4x8x8xf32> to vector<1x4x8x8xf32>
    tpu.vector_store %arg4[%c0_19, %c12, %c0_20, %c0_21], %26 {strides = array<i32>} : memref<1x16x8x8xf32, #tpu.memory_space<vmem>>, vector<1x4x8x8xf32>,
    return
  }
  func.func @transform_0(%arg0: i32, %arg1: i32) -> (i32, i32) {
    %c0_i32 = arith.constant 0 : i32
    %c0_i32_0 = arith.constant 0 : i32
    %c0_i32_1 = arith.constant 0 : i32
    return %c0_i32, %c0_i32_0 : i32, i32
  }
  func.func @transform_1(%arg0: i32, %arg1: i32) -> (i32, i32, i32, i32) {
    %c0_i32 = arith.constant 0 : i32
    %c0_i32_0 = arith.constant 0 : i32
    %c0_i32_1 = arith.constant 0 : i32
    return %arg0, %c0_i32, %arg1, %c0_i32_0 : i32, i32, i32, i32
  }
  func.func @transform_2(%arg0: i32, %arg1: i32) -> (i32, i32, i32, i32) {
    %c0_i32 = arith.constant 0 : i32
    %c0_i32_0 = arith.constant 0 : i32
    %c0_i32_1 = arith.constant 0 : i32
    return %arg0, %c0_i32, %arg1, %c0_i32_0 : i32, i32, i32, i32
  }
}

</mosaic_0001>

<llo_original>
// kernel: tpu_custom_call.1
$region0: #{tpu_custom_call.1}
  #allocation0 [shape = 'u32[]', space=smem, size = 0x4, offset = 0x4, fixed_abs, tag = 'smem constant byte address 0x4 - core index']
  #allocation1 [shape = 'u32[144,128]{1,0:T(1,128)}', space=vmem, size = 0x12000, scoped, tag = 'internal scratch']
  %s0 = inlined_call_operand.hbm [shape: f32[16,16], index: 0, kind: input, shape index: {}]
  %s1 = inlined_call_operand.hbm [shape: f32[2,4,8,32], index: 1, kind: input, shape index: {}]
  %s2 = inlined_call_operand.vmem [shape: f32[2,16,8,8], index: 2, kind: output, shape index: {}]
  %s3 = sld [smem:[#allocation0]]
  $region49: #{tpu_custom_call.1} parent=0
    _
  %s5 = ssub.s32 1, %s3
  %s6 = scalar_select 0, %s5, %s3
  $region1: #{tpu_custom_call.1} parent=0
    #allocation2 [shape = 'u8[8192]{0}', space=vmem, size = 0x2000, scoped, tag = 'input window, operand 0, single buffered']
    #allocation3 [shape = 's32[2]{0}', space=sflag, size = 0x8, scoped, tag = 'scoped memory for tpu_custom_call.1']
    #allocation4 [shape = 'u8[32768]{0}', space=vmem, size = 0x8000, scoped, tag = 'input window, operand 1']
    #allocation5 [shape = 's32[2]{0}', space=sflag, size = 0x8, scoped, tag = 'scoped memory for tpu_custom_call.1']
    %7 = vsyncpa [#allocation3], 0
    %8 = vsyncpa [#allocation5], 0
    %s9 = scalar_lea.sflag [#allocation5], 1
    %10 = vsyncpa %s9, 0
    loop: start=0, step=1, limit=4
    $region2: #{tpu_custom_call.1} parent=1 // loop_pre_header
      _
    $region3: #{tpu_custom_call.1} parent=1 // loop_header
      %s12 = sphi 0, %s16
      %p13 = scmp.ge.s32.totalorder %s12, 4
      %s19 = sphi 0, %s31
      %s20 = sphi 0, %s27
      %s21 = sphi 0, %s19
      %s22 = sphi 0, %s20
      %s23 = sphi 0, %s21
      %s24 = sphi 0, %s22
      %s32 = sphi 0, %s32
      %s34 = sphi 0, %s32
      %s35 = sphi 0, %s34
      %s49 = sphi 0, %s35
      %s57 = sphi 0, %s59
      %s60 = sphi 0, %s57
      %s61 = sphi 0, %s60
      %s77 = sphi 0, %s61
      %s85 = sphi 0, %s87
      %s88 = sphi 0, %s85
      %s89 = sphi 0, %s88
      %s105 = sphi 0, %s89
    $region4: #{tpu_custom_call.1} parent=1 // loop_header_branch
      %15 = sbr.rel (%p13) target = $region8
    $region5: #{tpu_custom_call.1} parent=1 // loop_body
      %s17 = ssub.s32 %s12, 1
      %s18 = ssub.s32 %s12, 2
      %s25 = sadd.s32 1, %s20
      %p26 = scmp.ge.s32.totalorder %s25, 1
      %s27 = scalar_select %p26, 0, %s25
      %s28 = sadd.s32 1, %s19
      %s29 = scalar_select %p26, %s28, %s19
      %p30 = scmp.ge.s32.totalorder %s29, 2
      %s31 = scalar_select %p30, 0, %s29
      %s33 = sadd.s32 %s32, 1
      %p36 = scmp.eq.s32.totalorder %s12, 1
      %p37 = scmp.ne.s32.totalorder %s32, %s34
      %p38 = scmp.eq.s32.totalorder %s12, 0
      %p39 = por %p37, %p38
      %p40 = scmp.ne.s32.totalorder %s32, %s34
      %p41 = scmp.eq.s32.totalorder %s17, 1
      %p42 = por %p40, %p41
      %p43 = scmp.ne.s32.totalorder %s34, %s35
      %p44 = scmp.eq.s32.totalorder %s17, 0
      %p45 = por %p43, %p44
      %p46 = scmp.ne.s32.totalorder %s34, %s35
      %p47 = scmp.eq.s32.totalorder %s18, 1
      %p48 = por %p46, %p47
      %p50 = scmp.ne.s32.totalorder %s35, %s49
      %p51 = scmp.eq.s32.totalorder %s18, 0
      %p52 = por %p50, %p51
      %s53 = ssub.s32 %s19, %s31
      %s54 = ssub.s32 %s20, %s27
      %s55 = sor.u32 %s53, %s54
      %p56 = scmp.eq.s32.totalorder %s55, 0
      %s58 = sadd.s32 %s57, 1
      %s59 = scalar_select %p56, %s57, %s58
      %p62 = pneg %p56
      %p63 = scmp.eq.s32.totalorder %s12, 1
      %p64 = por %p62, %p63
      %p65 = scmp.ne.s32.totalorder %s57, %s60
      %p66 = scmp.eq.s32.totalorder %s12, 0
      %p67 = por %p65, %p66
      %p68 = scmp.ne.s32.totalorder %s57, %s60
      %p69 = scmp.eq.s32.totalorder %s17, 1
      %p70 = por %p68, %p69
      %p71 = scmp.ne.s32.totalorder %s60, %s61
      %p72 = scmp.eq.s32.totalorder %s17, 0
      %p73 = por %p71, %p72
      %p74 = scmp.ne.s32.totalorder %s60, %s61
      %p75 = scmp.eq.s32.totalorder %s18, 1
      %p76 = por %p74, %p75
      %p78 = scmp.ne.s32.totalorder %s61, %s77
      %p79 = scmp.eq.s32.totalorder %s18, 0
      %p80 = por %p78, %p79
      %s81 = ssub.s32 %s19, %s31
      %s82 = ssub.s32 %s20, %s27
      %s83 = sor.u32 %s81, %s82
      %p84 = scmp.eq.s32.totalorder %s83, 0
      %s86 = sadd.s32 %s85, 1
      %s87 = scalar_select %p84, %s85, %s86
      %p90 = pneg %p84
      %p91 = scmp.eq.s32.totalorder %s12, 1
      %p92 = por %p90, %p91
      %p93 = scmp.ne.s32.totalorder %s85, %s88
      %p94 = scmp.eq.s32.totalorder %s12, 0
      %p95 = por %p93, %p94
      %p96 = scmp.ne.s32.totalorder %s85, %s88
      %p97 = scmp.eq.s32.totalorder %s17, 1
      %p98 = por %p96, %p97
      %p99 = scmp.ne.s32.totalorder %s88, %s89
      %p100 = scmp.eq.s32.totalorder %s17, 0
      %p101 = por %p99, %p100
      %p102 = scmp.ne.s32.totalorder %s88, %s89
      %p103 = scmp.eq.s32.totalorder %s18, 1
      %p104 = por %p102, %p103
      %p106 = scmp.ne.s32.totalorder %s89, %s105
      %p107 = scmp.eq.s32.totalorder %s18, 0
      %p108 = por %p106, %p107
      %p109 = scmp.le.s32.totalorder 1, %s12
      %p110 = scmp.lt.s32.totalorder %s12, 3
      %p111 = pnand %p109, %p110
      %p112 = pneg %p111
      // Predicated region
      $region9: #{tpu_custom_call.1} parent=5 // pred_check
        _
      $region10: #{tpu_custom_call.1} parent=5 // pred_check_branch
        %114 = sbr.rel (%p111) target = $region12
      $region11: #{tpu_custom_call.1} parent=5 // pred_region
        %s115 = ssub.s32 %s12, 1
        // Predicated region
        $region13: #{tpu_custom_call.1} parent=11 // pred_check
          %p116 = pneg %p45
        $region14: #{tpu_custom_call.1} parent=11 // pred_check_branch
          %118 = sbr.rel (%p116) target = $region16
        $region15: #{tpu_custom_call.1} parent=11 // pred_region
          %s120 = ssub.s32 256, 256
          %121 = vsyncadd [#allocation3], %s120
          %s122 = sshll.u32 [#allocation2], 4
          %s123 = int_to_ptr.vmem [resolvable:$true] %s122
          %128 = dma.hbm_to_vmem [thread:$0]  %s0, 256, %s123, [#allocation3], 128, 128, 8
        $region16: #{tpu_custom_call.1} parent=11 // pred_fallthru
          _
      $region12: #{tpu_custom_call.1} parent=5 // pred_fallthru
        _
      %p129 = scmp.lt.s32.totalorder %s12, 2
      // Predicated region
      $region17: #{tpu_custom_call.1} parent=5 // pred_check
        %p130 = pneg %p129
      $region18: #{tpu_custom_call.1} parent=5 // pred_check_branch
        %132 = sbr.rel (%p130) target = $region20
      $region19: #{tpu_custom_call.1} parent=5 // pred_region
        // Predicated region
        $region21: #{tpu_custom_call.1} parent=19 // pred_check
          %p133 = pneg %p67
        $region22: #{tpu_custom_call.1} parent=19 // pred_check_branch
          %135 = sbr.rel (%p133) target = $region24
        $region23: #{tpu_custom_call.1} parent=19 // pred_region
          %s136 = sand.u32 %s57, 1
          %s137 = scalar_lea.sflag [#allocation5], %s136
          %s138 = sand.u32 %s57, 1
          %s139 = smul.addr %s138, 32
          %s140 = scalar_lea.vmem [#allocation4], %s139
          %s142 = ssub.s32 512, 512
          %143 = vsyncadd %s137, %s142
          %s144 = smul.addr %s19, 4
          %s145 = sadd.s32 %s20, %s144
          %s146 = smul.addr %s145, 128
          %s147 = scalar_lea.hbm %s1, %s146
          %s148 = sshll.u32 %s140, 4
          %s149 = int_to_ptr.vmem [resolvable:$true] %s148
          %154 = dma.hbm_to_vmem [thread:$0]  %s147, 512, %s149, %s137, 128, 128, 8
        $region24: #{tpu_custom_call.1} parent=19 // pred_fallthru
          _
      $region20: #{tpu_custom_call.1} parent=5 // pred_fallthru
        _
      %p155 = scmp.le.s32.totalorder 1, %s12
      %p156 = scmp.lt.s32.totalorder %s12, 3
      %p157 = pnand %p155, %p156
      %p158 = pneg %p157
      // Predicated region
      $region25: #{tpu_custom_call.1} parent=5 // pred_check
        _
      $region26: #{tpu_custom_call.1} parent=5 // pred_check_branch
        %160 = sbr.rel (%p157) target = $region28
      $region27: #{tpu_custom_call.1} parent=5 // pred_region
        %s161 = ssub.s32 %s12, 1
        // Predicated region
        $region29: #{tpu_custom_call.1} parent=27 // pred_check
          %p162 = pneg %p45
        $region30: #{tpu_custom_call.1} parent=27 // pred_check_branch
          %164 = sbr.rel (%p162) target = $region32
        $region31: #{tpu_custom_call.1} parent=27 // pred_region
          %165 = dma.done [#allocation3], 256
        $region32: #{tpu_custom_call.1} parent=27 // pred_fallthru
          _
        %s166 = sand.u32 %s60, 1
        %s167 = scalar_lea.sflag [#allocation5], %s166
        %s168 = sand.u32 %s60, 1
        %s169 = smul.addr %s168, 32
        %s170 = scalar_lea.vmem [#allocation4], %s169
        // Predicated region
        $region33: #{tpu_custom_call.1} parent=27 // pred_check
          %p171 = pneg %p73
        $region34: #{tpu_custom_call.1} parent=27 // pred_check_branch
          %173 = sbr.rel (%p171) target = $region36
        $region35: #{tpu_custom_call.1} parent=27 // pred_region
          %174 = dma.done %s167, 512
        $region36: #{tpu_custom_call.1} parent=27 // pred_fallthru
          _
        %p175 = pneg %p45
        %p176 = pneg %p42
        %s177 = sand.u32 %s60, 1
        %s178 = scalar_lea.sflag [#allocation5], %s177
        %s179 = sand.u32 %s60, 1
        %s180 = smul.addr %s179, 32
        %s181 = scalar_lea.vmem [#allocation4], %s180
        %p182 = pneg %p73
        %p183 = pneg %p70
        %p184 = pneg %p101
        %p185 = pneg %p98
        %p186 = scmp.lt.s32.totalorder %s21, 1
        %s187 = scalar_select %p186, %s21, 1
        %p188 = scmp.lt.s32.totalorder %s22, 0
        %s189 = scalar_select %p188, %s22, 0
        %s190 = smul.addr %s187, 16
        %s191 = sadd.s32 %s189, %s190
        %s192 = smul.addr %s191, 8
        %s193 = scalar_lea.vmem %s2, %s192
        %p194 = scmp.lt.s32.totalorder %s21, 1
        %s195 = scalar_select %p194, %s21, 1
        %p196 = scmp.lt.s32.totalorder %s22, 0
        %s197 = scalar_select %p196, %s22, 0
        %s198 = smul.addr %s195, 16
        %s199 = sadd.s32 %s197, %s198
        %s200 = smul.addr %s199, 8
        %s201 = scalar_lea.vmem %s2, %s200
        %v202 = vld [vmem:[#allocation2] sm:$0xff]
        %v203 = vld [vmem:[#allocation2 + $0x8] sm:$0xff]
        %v204 = vld [vmem:[%s170] sm:$0xff]
        %v205 = vld [vmem:[%s170 + $0x8] sm:$0xff]
        %v206 = vld [vmem:[%s170 + $0x10] sm:$0xff]
        %v207 = vld [vmem:[%s170 + $0x18] sm:$0xff]
        %vm208 = vcmask 130048
        %v210 = vsel %vm208, %v204, 0
        %v213 = vsel %vm208, %v205, 0
        %v216 = vsel %vm208, %v206, 0
        %v219 = vsel %vm208, %v207, 0
        %221 = vmatprep.subr.mxu0 0.0
        %v222 = vand.u32 %v202, 4294901760
        %223 = vmatpush1.msra.mxu0 %v222
        %224 = vmatprep.subr.mxu0 0.0
        %v225 = vand.u32 %v203, 4294901760
        %226 = vmatpush1.msra.mxu0 %v225
        %227 = vmatprep.subr.mxu0 0.0
        %228 = vmatpush1.msra.mxu0 0.0
        %229 = vmatprep.subr.mxu0 0.0
        %230 = vmatpush1.msra.mxu0 0.0
        %231 = vmatprep.subr.mxu0 0.0
        %232 = vmatpush1.msra.mxu0 0.0
        %233 = vmatprep.subr.mxu0 0.0
        %234 = vmatpush1.msra.mxu0 0.0
        %235 = vmatprep.subr.mxu0 0.0
        %236 = vmatpush1.msra.mxu0 0.0
        %237 = vmatprep.subr.mxu0 0.0
        %238 = vmatpush1.msra.mxu0 0.0
        %239 = vmatprep.subr.mxu0 0.0
        %240 = vmatpush1.msra.mxu0 0.0
        %241 = vmatprep.subr.mxu0 0.0
        %242 = vmatpush1.msra.mxu0 0.0
        %243 = vmatprep.subr.mxu0 0.0
        %244 = vmatpush1.msra.mxu0 0.0
        %245 = vmatprep.subr.mxu0 0.0
        %246 = vmatpush1.msra.mxu0 0.0
        %247 = vmatprep.subr.mxu0 0.0
        %248 = vmatpush1.msra.mxu0 0.0
        %249 = vmatprep.subr.mxu0 0.0
        %250 = vmatpush1.msra.mxu0 0.0
        %251 = vmatprep.subr.mxu0 0.0
        %252 = vmatpush1.msra.mxu0 0.0
        %253 = vmatprep.subr.mxu0 0.0
        %254 = vmatpush1.msra.mxu0 0.0
        %255 = vmatprep.subr.mxu0 0.0
        %256 = vmatpush1.msra.mxu0 0.0
        %257 = vmatprep.subr.mxu0 0.0
        %258 = vmatpush1.msra.mxu0 0.0
        %259 = vmatprep.subr.mxu0 0.0
        %260 = vmatpush1.msra.mxu0 0.0
        %261 = vmatprep.subr.mxu0 0.0
        %262 = vmatpush1.msra.mxu0 0.0
        %263 = vmatprep.subr.mxu0 0.0
        %264 = vmatpush1.msra.mxu0 0.0
        %265 = vmatprep.subr.mxu0 0.0
        %266 = vmatpush1.msra.mxu0 0.0
        %267 = vmatprep.subr.mxu0 0.0
        %268 = vmatpush1.msra.mxu0 0.0
        %269 = vmatprep.subr.mxu0 0.0
        %270 = vmatpush1.msra.mxu0 0.0
        %271 = vmatprep.subr.mxu0 0.0
        %272 = vmatpush1.msra.mxu0 0.0
        %273 = vmatprep.subr.mxu0 0.0
        %274 = vmatpush1.msra.mxu0 0.0
        %275 = vmatprep.subr.mxu0 0.0
        %276 = vmatpush1.msra.mxu0 0.0
        %277 = vmatprep.subr.mxu0 0.0
        %278 = vmatpush1.msra.mxu0 0.0
        %279 = vmatprep.subr.mxu0 0.0
        %280 = vmatpush1.msra.mxu0 0.0
        %281 = vmatprep.subr.mxu0 0.0
        %282 = vmatpush1.msra.mxu0 0.0
        %283 = vmatprep.subr.mxu0 0.0
        %284 = vmatpush1.msra.mxu0 0.0
        %285 = vmatprep.subr.mxu0 0.0
        %286 = vmatpush1.msra.mxu0 0.0
        %287 = vmatprep.mubr.f32.mxu0 0.0
        %v288 = vand.u32 %v210, 4294901760
        %v289 = vsub.f32 %v210, %v288
        %v290 = vand.u32 %v289, 4294901760
        %v291 = vsub.f32 %v289, %v290
        %v292 = vand.u32 %v291, 4294901760
        %293 = vmatmul.mubr.f32.gmra.mrb[0].mxu0 %v292
        %v294 = vpop.f32.mrb[0].mxu0
        %v295 = vadd.f32 0.0, %v294
        %v296 = vpop.f32.mrb[0].mxu0
        %297 = vmatprep.mubr.f32.mxu0 0.0
        %v298 = vand.u32 %v213, 4294901760
        %v299 = vsub.f32 %v213, %v298
        %v300 = vand.u32 %v299, 4294901760
        %v301 = vsub.f32 %v299, %v300
        %v302 = vand.u32 %v301, 4294901760
        %303 = vmatmul.mubr.f32.gmra.mrb[0].mxu0 %v302
        %v304 = vpop.f32.mrb[0].mxu0
        %v305 = vadd.f32 0.0, %v304
        %v306 = vpop.f32.mrb[0].mxu0
        %307 = vmatprep.mubr.f32.mxu0 0.0
        %v308 = vand.u32 %v216, 4294901760
        %v309 = vsub.f32 %v216, %v308
        %v310 = vand.u32 %v309, 4294901760
        %v311 = vsub.f32 %v309, %v310
        %v312 = vand.u32 %v311, 4294901760
        %313 = vmatmul.mubr.f32.gmra.mrb[0].mxu0 %v312
        %v314 = vpop.f32.mrb[0].mxu0
        %v315 = vadd.f32 0.0, %v314
        %v316 = vpop.f32.mrb[0].mxu0
        %317 = vmatprep.mubr.f32.mxu0 0.0
        %v318 = vand.u32 %v219, 4294901760
        %v319 = vsub.f32 %v219, %v318
        %v320 = vand.u32 %v319, 4294901760
        %v321 = vsub.f32 %v319, %v320
        %v322 = vand.u32 %v321, 4294901760
        %323 = vmatmul.mubr.f32.gmra.mrb[0].mxu0 %v322
        %v324 = vpop.f32.mrb[0].mxu0
        %v325 = vadd.f32 0.0, %v324
        %v326 = vpop.f32.mrb[0].mxu0
        %327 = vdwg.mxu0
        %328 = vmatprep.subr.mxu0 0.0
        %v329 = vand.u32 %v202, 4294901760
        %v330 = vsub.f32 %v202, %v329
        %v331 = vand.u32 %v330, 4294901760
        %v332 = vsub.f32 %v330, %v331
        %v333 = vand.u32 %v332, 4294901760
        %334 = vmatpush1.msra.mxu0 %v333
        %335 = vmatprep.subr.mxu0 0.0
        %v336 = vand.u32 %v203, 4294901760
        %v337 = vsub.f32 %v203, %v336
        %v338 = vand.u32 %v337, 4294901760
        %v339 = vsub.f32 %v337, %v338
        %v340 = vand.u32 %v339, 4294901760
        %341 = vmatpush1.msra.mxu0 %v340
        %342 = vmatprep.subr.mxu0 0.0
        %343 = vmatpush1.msra.mxu0 0.0
        %344 = vmatprep.subr.mxu0 0.0
        %345 = vmatpush1.msra.mxu0 0.0
        %346 = vmatprep.subr.mxu0 0.0
        %347 = vmatpush1.msra.mxu0 0.0
        %348 = vmatprep.subr.mxu0 0.0
        %349 = vmatpush1.msra.mxu0 0.0
        %350 = vmatprep.subr.mxu0 0.0
        %351 = vmatpush1.msra.mxu0 0.0
        %352 = vmatprep.subr.mxu0 0.0
        %353 = vmatpush1.msra.mxu0 0.0
        %354 = vmatprep.subr.mxu0 0.0
        %355 = vmatpush1.msra.mxu0 0.0
        %356 = vmatprep.subr.mxu0 0.0
        %357 = vmatpush1.msra.mxu0 0.0
        %358 = vmatprep.subr.mxu0 0.0
        %359 = vmatpush1.msra.mxu0 0.0
        %360 = vmatprep.subr.mxu0 0.0
        %361 = vmatpush1.msra.mxu0 0.0
        %362 = vmatprep.subr.mxu0 0.0
        %363 = vmatpush1.msra.mxu0 0.0
        %364 = vmatprep.subr.mxu0 0.0
        %365 = vmatpush1.msra.mxu0 0.0
        %366 = vmatprep.subr.mxu0 0.0
        %367 = vmatpush1.msra.mxu0 0.0
        %368 = vmatprep.subr.mxu0 0.0
        %369 = vmatpush1.msra.mxu0 0.0
        %370 = vmatprep.subr.mxu0 0.0
        %371 = vmatpush1.msra.mxu0 0.0
        %372 = vmatprep.subr.mxu0 0.0
        %373 = vmatpush1.msra.mxu0 0.0
        %374 = vmatprep.subr.mxu0 0.0
        %375 = vmatpush1.msra.mxu0 0.0
        %376 = vmatprep.subr.mxu0 0.0
        %377 = vmatpush1.msra.mxu0 0.0
        %378 = vmatprep.subr.mxu0 0.0
        %379 = vmatpush1.msra.mxu0 0.0
        %380 = vmatprep.subr.mxu0 0.0
        %381 = vmatpush1.msra.mxu0 0.0
        %382 = vmatprep.subr.mxu0 0.0
        %383 = vmatpush1.msra.mxu0 0.0
        %384 = vmatprep.subr.mxu0 0.0
        %385 = vmatpush1.msra.mxu0 0.0
        %386 = vmatprep.subr.mxu0 0.0
        %387 = vmatpush1.msra.mxu0 0.0
        %388 = vmatprep.subr.mxu0 0.0
        %389 = vmatpush1.msra.mxu0 0.0
        %390 = vmatprep.subr.mxu0 0.0
        %391 = vmatpush1.msra.mxu0 0.0
        %392 = vmatprep.subr.mxu0 0.0
        %393 = vmatpush1.msra.mxu0 0.0
        %394 = vmatprep.subr.mxu0 0.0
        %395 = vmatpush1.msra.mxu0 0.0
        %396 = vmatprep.subr.mxu0 0.0
        %397 = vmatpush1.msra.mxu0 0.0
        %398 = vmatprep.subr.mxu0 0.0
        %399 = vmatpush1.msra.mxu0 0.0
        %400 = vmatprep.subr.mxu0 0.0
        %401 = vmatpush1.msra.mxu0 0.0
        %402 = vmatprep.mubr.f32.mxu0 0.0
        %v403 = vand.u32 %v210, 4294901760
        %404 = vmatmul.mubr.f32.gmra.mrb[0].mxu0 %v403
        %v405 = vpop.f32.mrb[0].mxu0
        %v406 = vadd.f32 %v295, %v405
        %v407 = vpop.f32.mrb[0].mxu0
        %408 = vmatprep.mubr.f32.mxu0 0.0
        %v409 = vand.u32 %v213, 4294901760
        %410 = vmatmul.mubr.f32.gmra.mrb[0].mxu0 %v409
        %v411 = vpop.f32.mrb[0].mxu0
        %v412 = vadd.f32 %v305, %v411
        %v413 = vpop.f32.mrb[0].mxu0
        %414 = vmatprep.mubr.f32.mxu0 0.0
        %v415 = vand.u32 %v216, 4294901760
        %416 = vmatmul.mubr.f32.gmra.mrb[0].mxu0 %v415
        %v417 = vpop.f32.mrb[0].mxu0
        %v418 = vadd.f32 %v315, %v417
        %v419 = vpop.f32.mrb[0].mxu0
        %420 = vmatprep.mubr.f32.mxu0 0.0
        %v421 = vand.u32 %v219, 4294901760
        %422 = vmatmul.mubr.f32.gmra.mrb[0].mxu0 %v421
        %v423 = vpop.f32.mrb[0].mxu0
        %v424 = vadd.f32 %v325, %v423
        %v425 = vpop.f32.mrb[0].mxu0
        %426 = vdwg.mxu0
        %427 = vmatprep.subr.mxu0 0.0
        %v428 = vand.u32 %v202, 4294901760
        %v429 = vsub.f32 %v202, %v428
        %430 = vmatpush1.msra.mxu0 %v429
        %431 = vmatprep.subr.mxu0 0.0
        %v432 = vand.u32 %v203, 4294901760
        %v433 = vsub.f32 %v203, %v432
        %434 = vmatpush1.msra.mxu0 %v433
        %435 = vmatprep.subr.mxu0 0.0
        %436 = vmatpush1.msra.mxu0 0.0
        %437 = vmatprep.subr.mxu0 0.0
        %438 = vmatpush1.msra.mxu0 0.0
        %439 = vmatprep.subr.mxu0 0.0
        %440 = vmatpush1.msra.mxu0 0.0
        %441 = vmatprep.subr.mxu0 0.0
        %442 = vmatpush1.msra.mxu0 0.0
        %443 = vmatprep.subr.mxu0 0.0
        %444 = vmatpush1.msra.mxu0 0.0
        %445 = vmatprep.subr.mxu0 0.0
        %446 = vmatpush1.msra.mxu0 0.0
        %447 = vmatprep.subr.mxu0 0.0
        %448 = vmatpush1.msra.mxu0 0.0
        %449 = vmatprep.subr.mxu0 0.0
        %450 = vmatpush1.msra.mxu0 0.0
        %451 = vmatprep.subr.mxu0 0.0
        %452 = vmatpush1.msra.mxu0 0.0
        %453 = vmatprep.subr.mxu0 0.0
        %454 = vmatpush1.msra.mxu0 0.0
        %455 = vmatprep.subr.mxu0 0.0
        %456 = vmatpush1.msra.mxu0 0.0
        %457 = vmatprep.subr.mxu0 0.0
        %458 = vmatpush1.msra.mxu0 0.0
        %459 = vmatprep.subr.mxu0 0.0
        %460 = vmatpush1.msra.mxu0 0.0
        %461 = vmatprep.subr.mxu0 0.0
        %462 = vmatpush1.msra.mxu0 0.0
        %463 = vmatprep.subr.mxu0 0.0
        %464 = vmatpush1.msra.mxu0 0.0
        %465 = vmatprep.subr.mxu0 0.0
        %466 = vmatpush1.msra.mxu0 0.0
        %467 = vmatprep.subr.mxu0 0.0
        %468 = vmatpush1.msra.mxu0 0.0
        %469 = vmatprep.subr.mxu0 0.0
        %470 = vmatpush1.msra.mxu0 0.0
        %471 = vmatprep.subr.mxu0 0.0
        %472 = vmatpush1.msra.mxu0 0.0
        %473 = vmatprep.subr.mxu0 0.0
        %474 = vmatpush1.msra.mxu0 0.0
        %475 = vmatprep.subr.mxu0 0.0
        %476 = vmatpush1.msra.mxu0 0.0
        %477 = vmatprep.subr.mxu0 0.0
        %478 = vmatpush1.msra.mxu0 0.0
        %479 = vmatprep.subr.mxu0 0.0
        %480 = vmatpush1.msra.mxu0 0.0
        %481 = vmatprep.subr.mxu0 0.0
        %482 = vmatpush1.msra.mxu0 0.0
        %483 = vmatprep.subr.mxu0 0.0
        %484 = vmatpush1.msra.mxu0 0.0
        %485 = vmatprep.subr.mxu0 0.0
        %486 = vmatpush1.msra.mxu0 0.0
        %487 = vmatprep.subr.mxu0 0.0
        %488 = vmatpush1.msra.mxu0 0.0
        %489 = vmatprep.subr.mxu0 0.0
        %490 = vmatpush1.msra.mxu0 0.0
        %491 = vmatprep.subr.mxu0 0.0
        %492 = vmatpush1.msra.mxu0 0.0
        %493 = vmatprep.subr.mxu0 0.0
        %494 = vmatpush1.msra.mxu0 0.0
        %495 = vmatprep.mubr.f32.mxu0 0.0
        %v496 = vand.u32 %v210, 4294901760
        %v497 = vsub.f32 %v210, %v496
        %498 = vmatmul.mubr.f32.gmra.mrb[0].mxu0 %v497
        %v499 = vpop.f32.mrb[0].mxu0
        %v500 = vadd.f32 %v406, %v499
        %v501 = vpop.f32.mrb[0].mxu0
        %502 = vmatprep.mubr.f32.mxu0 0.0
        %v503 = vand.u32 %v213, 4294901760
        %v504 = vsub.f32 %v213, %v503
        %505 = vmatmul.mubr.f32.gmra.mrb[0].mxu0 %v504
        %v506 = vpop.f32.mrb[0].mxu0
        %v507 = vadd.f32 %v412, %v506
        %v508 = vpop.f32.mrb[0].mxu0
        %509 = vmatprep.mubr.f32.mxu0 0.0
        %v510 = vand.u32 %v216, 4294901760
        %v511 = vsub.f32 %v216, %v510
        %512 = vmatmul.mubr.f32.gmra.mrb[0].mxu0 %v511
        %v513 = vpop.f32.mrb[0].mxu0
        %v514 = vadd.f32 %v418, %v513
        %v515 = vpop.f32.mrb[0].mxu0
        %516 = vmatprep.mubr.f32.mxu0 0.0
        %v517 = vand.u32 %v219, 4294901760
        %v518 = vsub.f32 %v219, %v517
        %519 = vmatmul.mubr.f32.gmra.mrb[0].mxu0 %v518
        %v520 = vpop.f32.mrb[0].mxu0
        %v521 = vadd.f32 %v424, %v520
        %v522 = vpop.f32.mrb[0].mxu0
        %523 = vdwg.mxu0
        %524 = vmatprep.subr.mxu0 0.0
        %v525 = vand.u32 %v202, 4294901760
        %526 = vmatpush1.msra.mxu0 %v525
        %527 = vmatprep.subr.mxu0 0.0
        %v528 = vand.u32 %v203, 4294901760
        %529 = vmatpush1.msra.mxu0 %v528
        %530 = vmatprep.subr.mxu0 0.0
        %531 = vmatpush1.msra.mxu0 0.0
        %532 = vmatprep.subr.mxu0 0.0
        %533 = vmatpush1.msra.mxu0 0.0
        %534 = vmatprep.subr.mxu0 0.0
        %535 = vmatpush1.msra.mxu0 0.0
        %536 = vmatprep.subr.mxu0 0.0
        %537 = vmatpush1.msra.mxu0 0.0
        %538 = vmatprep.subr.mxu0 0.0
        %539 = vmatpush1.msra.mxu0 0.0
        %540 = vmatprep.subr.mxu0 0.0
        %541 = vmatpush1.msra.mxu0 0.0
        %542 = vmatprep.subr.mxu0 0.0
        %543 = vmatpush1.msra.mxu0 0.0
        %544 = vmatprep.subr.mxu0 0.0
        %545 = vmatpush1.msra.mxu0 0.0
        %546 = vmatprep.subr.mxu0 0.0
        %547 = vmatpush1.msra.mxu0 0.0
        %548 = vmatprep.subr.mxu0 0.0
        %549 = vmatpush1.msra.mxu0 0.0
        %550 = vmatprep.subr.mxu0 0.0
        %551 = vmatpush1.msra.mxu0 0.0
        %552 = vmatprep.subr.mxu0 0.0
        %553 = vmatpush1.msra.mxu0 0.0
        %554 = vmatprep.subr.mxu0 0.0
        %555 = vmatpush1.msra.mxu0 0.0
        %556 = vmatprep.subr.mxu0 0.0
        %557 = vmatpush1.msra.mxu0 0.0
        %558 = vmatprep.subr.mxu0 0.0
        %559 = vmatpush1.msra.mxu0 0.0
        %560 = vmatprep.subr.mxu0 0.0
        %561 = vmatpush1.msra.mxu0 0.0
        %562 = vmatprep.subr.mxu0 0.0
        %563 = vmatpush1.msra.mxu0 0.0
        %564 = vmatprep.subr.mxu0 0.0
        %565 = vmatpush1.msra.mxu0 0.0
        %566 = vmatprep.subr.mxu0 0.0
        %567 = vmatpush1.msra.mxu0 0.0
        %568 = vmatprep.subr.mxu0 0.0
        %569 = vmatpush1.msra.mxu0 0.0
        %570 = vmatprep.subr.mxu0 0.0
        %571 = vmatpush1.msra.mxu0 0.0
        %572 = vmatprep.subr.mxu0 0.0
        %573 = vmatpush1.msra.mxu0 0.0
        %574 = vmatprep.subr.mxu0 0.0
        %575 = vmatpush1.msra.mxu0 0.0
        %576 = vmatprep.subr.mxu0 0.0
        %577 = vmatpush1.msra.mxu0 0.0
        %578 = vmatprep.subr.mxu0 0.0
        %579 = vmatpush1.msra.mxu0 0.0
        %580 = vmatprep.subr.mxu0 0.0
        %581 = vmatpush1.msra.mxu0 0.0
        %582 = vmatprep.subr.mxu0 0.0
        %583 = vmatpush1.msra.mxu0 0.0
        %584 = vmatprep.subr.mxu0 0.0
        %585 = vmatpush1.msra.mxu0 0.0
        %586 = vmatprep.subr.mxu0 0.0
        %587 = vmatpush1.msra.mxu0 0.0
        %588 = vmatprep.subr.mxu0 0.0
        %589 = vmatpush1.msra.mxu0 0.0
        %590 = vmatprep.mubr.f32.mxu0 0.0
        %v591 = vand.u32 %v210, 4294901760
        %v592 = vsub.f32 %v210, %v591
        %v593 = vand.u32 %v592, 4294901760
        %594 = vmatmul.mubr.f32.gmra.mrb[0].mxu0 %v593
        %v595 = vpop.f32.mrb[0].mxu0
        %v596 = vadd.f32 %v500, %v595
        %v597 = vpop.f32.mrb[0].mxu0
        %598 = vmatprep.mubr.f32.mxu0 0.0
        %v599 = vand.u32 %v213, 4294901760
        %v600 = vsub.f32 %v213, %v599
        %v601 = vand.u32 %v600, 4294901760
        %602 = vmatmul.mubr.f32.gmra.mrb[0].mxu0 %v601
        %v603 = vpop.f32.mrb[0].mxu0
        %v604 = vadd.f32 %v507, %v603
        %v605 = vpop.f32.mrb[0].mxu0
        %606 = vmatprep.mubr.f32.mxu0 0.0
        %v607 = vand.u32 %v216, 4294901760
        %v608 = vsub.f32 %v216, %v607
        %v609 = vand.u32 %v608, 4294901760
        %610 = vmatmul.mubr.f32.gmra.mrb[0].mxu0 %v609
        %v611 = vpop.f32.mrb[0].mxu0
        %v612 = vadd.f32 %v514, %v611
        %v613 = vpop.f32.mrb[0].mxu0
        %614 = vmatprep.mubr.f32.mxu0 0.0
        %v615 = vand.u32 %v219, 4294901760
        %v616 = vsub.f32 %v219, %v615
        %v617 = vand.u32 %v616, 4294901760
        %618 = vmatmul.mubr.f32.gmra.mrb[0].mxu0 %v617
        %v619 = vpop.f32.mrb[0].mxu0
        %v620 = vadd.f32 %v521, %v619
        %v621 = vpop.f32.mrb[0].mxu0
        %622 = vdwg.mxu0
        %623 = vmatprep.subr.mxu0 0.0
        %v624 = vand.u32 %v202, 4294901760
        %v625 = vsub.f32 %v202, %v624
        %v626 = vand.u32 %v625, 4294901760
        %627 = vmatpush1.msra.mxu0 %v626
        %628 = vmatprep.subr.mxu0 0.0
        %v629 = vand.u32 %v203, 4294901760
        %v630 = vsub.f32 %v203, %v629
        %v631 = vand.u32 %v630, 4294901760
        %632 = vmatpush1.msra.mxu0 %v631
        %633 = vmatprep.subr.mxu0 0.0
        %634 = vmatpush1.msra.mxu0 0.0
        %635 = vmatprep.subr.mxu0 0.0
        %636 = vmatpush1.msra.mxu0 0.0
        %637 = vmatprep.subr.mxu0 0.0
        %638 = vmatpush1.msra.mxu0 0.0
        %639 = vmatprep.subr.mxu0 0.0
        %640 = vmatpush1.msra.mxu0 0.0
        %641 = vmatprep.subr.mxu0 0.0
        %642 = vmatpush1.msra.mxu0 0.0
        %643 = vmatprep.subr.mxu0 0.0
        %644 = vmatpush1.msra.mxu0 0.0
        %645 = vmatprep.subr.mxu0 0.0
        %646 = vmatpush1.msra.mxu0 0.0
        %647 = vmatprep.subr.mxu0 0.0
        %648 = vmatpush1.msra.mxu0 0.0
        %649 = vmatprep.subr.mxu0 0.0
        %650 = vmatpush1.msra.mxu0 0.0
        %651 = vmatprep.subr.mxu0 0.0
        %652 = vmatpush1.msra.mxu0 0.0
        %653 = vmatprep.subr.mxu0 0.0
        %654 = vmatpush1.msra.mxu0 0.0
        %655 = vmatprep.subr.mxu0 0.0
        %656 = vmatpush1.msra.mxu0 0.0
        %657 = vmatprep.subr.mxu0 0.0
        %658 = vmatpush1.msra.mxu0 0.0
        %659 = vmatprep.subr.mxu0 0.0
        %660 = vmatpush1.msra.mxu0 0.0
        %661 = vmatprep.subr.mxu0 0.0
        %662 = vmatpush1.msra.mxu0 0.0
        %663 = vmatprep.subr.mxu0 0.0
        %664 = vmatpush1.msra.mxu0 0.0
        %665 = vmatprep.subr.mxu0 0.0
        %666 = vmatpush1.msra.mxu0 0.0
        %667 = vmatprep.subr.mxu0 0.0
        %668 = vmatpush1.msra.mxu0 0.0
        %669 = vmatprep.subr.mxu0 0.0
        %670 = vmatpush1.msra.mxu0 0.0
        %671 = vmatprep.subr.mxu0 0.0
        %672 = vmatpush1.msra.mxu0 0.0
        %673 = vmatprep.subr.mxu0 0.0
        %674 = vmatpush1.msra.mxu0 0.0
        %675 = vmatprep.subr.mxu0 0.0
        %676 = vmatpush1.msra.mxu0 0.0
        %677 = vmatprep.subr.mxu0 0.0
        %678 = vmatpush1.msra.mxu0 0.0
        %679 = vmatprep.subr.mxu0 0.0
        %680 = vmatpush1.msra.mxu0 0.0
        %681 = vmatprep.subr.mxu0 0.0
        %682 = vmatpush1.msra.mxu0 0.0
        %683 = vmatprep.subr.mxu0 0.0
        %684 = vmatpush1.msra.mxu0 0.0
        %685 = vmatprep.subr.mxu0 0.0
        %686 = vmatpush1.msra.mxu0 0.0
        %687 = vmatprep.subr.mxu0 0.0
        %688 = vmatpush1.msra.mxu0 0.0
        %689 = vmatprep.subr.mxu0 0.0
        %690 = vmatpush1.msra.mxu0 0.0
        %691 = vmatprep.subr.mxu0 0.0
        %692 = vmatpush1.msra.mxu0 0.0
        %693 = vmatprep.mubr.f32.mxu0 0.0
        %v694 = vand.u32 %v210, 4294901760
        %695 = vmatmul.mubr.f32.gmra.mrb[0].mxu0 %v694
        %v696 = vpop.f32.mrb[0].mxu0
        %v697 = vadd.f32 %v596, %v696
        %v698 = vpop.f32.mrb[0].mxu0
        %699 = vmatprep.mubr.f32.mxu0 0.0
        %v700 = vand.u32 %v213, 4294901760
        %701 = vmatmul.mubr.f32.gmra.mrb[0].mxu0 %v700
        %v702 = vpop.f32.mrb[0].mxu0
        %v703 = vadd.f32 %v604, %v702
        %v704 = vpop.f32.mrb[0].mxu0
        %705 = vmatprep.mubr.f32.mxu0 0.0
        %v706 = vand.u32 %v216, 4294901760
        %707 = vmatmul.mubr.f32.gmra.mrb[0].mxu0 %v706
        %v708 = vpop.f32.mrb[0].mxu0
        %v709 = vadd.f32 %v612, %v708
        %v710 = vpop.f32.mrb[0].mxu0
        %711 = vmatprep.mubr.f32.mxu0 0.0
        %v712 = vand.u32 %v219, 4294901760
        %713 = vmatmul.mubr.f32.gmra.mrb[0].mxu0 %v712
        %v714 = vpop.f32.mrb[0].mxu0
        %v715 = vadd.f32 %v620, %v714
        %v716 = vpop.f32.mrb[0].mxu0
        %717 = vdwg.mxu0
        %718 = vmatprep.subr.mxu0 0.0
        %v719 = vand.u32 %v202, 4294901760
        %720 = vmatpush1.msra.mxu0 %v719
        %721 = vmatprep.subr.mxu0 0.0
        %v722 = vand.u32 %v203, 4294901760
        %723 = vmatpush1.msra.mxu0 %v722
        %724 = vmatprep.subr.mxu0 0.0
        %725 = vmatpush1.msra.mxu0 0.0
        %726 = vmatprep.subr.mxu0 0.0
        %727 = vmatpush1.msra.mxu0 0.0
        %728 = vmatprep.subr.mxu0 0.0
        %729 = vmatpush1.msra.mxu0 0.0
        %730 = vmatprep.subr.mxu0 0.0
        %731 = vmatpush1.msra.mxu0 0.0
        %732 = vmatprep.subr.mxu0 0.0
        %733 = vmatpush1.msra.mxu0 0.0
        %734 = vmatprep.subr.mxu0 0.0
        %735 = vmatpush1.msra.mxu0 0.0
        %736 = vmatprep.subr.mxu0 0.0
        %737 = vmatpush1.msra.mxu0 0.0
        %738 = vmatprep.subr.mxu0 0.0
        %739 = vmatpush1.msra.mxu0 0.0
        %740 = vmatprep.subr.mxu0 0.0
        %741 = vmatpush1.msra.mxu0 0.0
        %742 = vmatprep.subr.mxu0 0.0
        %743 = vmatpush1.msra.mxu0 0.0
        %744 = vmatprep.subr.mxu0 0.0
        %745 = vmatpush1.msra.mxu0 0.0
        %746 = vmatprep.subr.mxu0 0.0
        %747 = vmatpush1.msra.mxu0 0.0
        %748 = vmatprep.subr.mxu0 0.0
        %749 = vmatpush1.msra.mxu0 0.0
        %750 = vmatprep.subr.mxu0 0.0
        %751 = vmatpush1.msra.mxu0 0.0
        %752 = vmatprep.subr.mxu0 0.0
        %753 = vmatpush1.msra.mxu0 0.0
        %754 = vmatprep.subr.mxu0 0.0
        %755 = vmatpush1.msra.mxu0 0.0
        %756 = vmatprep.subr.mxu0 0.0
        %757 = vmatpush1.msra.mxu0 0.0
        %758 = vmatprep.subr.mxu0 0.0
        %759 = vmatpush1.msra.mxu0 0.0
        %760 = vmatprep.subr.mxu0 0.0
        %761 = vmatpush1.msra.mxu0 0.0
        %762 = vmatprep.subr.mxu0 0.0
        %763 = vmatpush1.msra.mxu0 0.0
        %764 = vmatprep.subr.mxu0 0.0
        %765 = vmatpush1.msra.mxu0 0.0
        %766 = vmatprep.subr.mxu0 0.0
        %767 = vmatpush1.msra.mxu0 0.0
        %768 = vmatprep.subr.mxu0 0.0
        %769 = vmatpush1.msra.mxu0 0.0
        %770 = vmatprep.subr.mxu0 0.0
        %771 = vmatpush1.msra.mxu0 0.0
        %772 = vmatprep.subr.mxu0 0.0
        %773 = vmatpush1.msra.mxu0 0.0
        %774 = vmatprep.subr.mxu0 0.0
        %775 = vmatpush1.msra.mxu0 0.0
        %776 = vmatprep.subr.mxu0 0.0
        %777 = vmatpush1.msra.mxu0 0.0
        %778 = vmatprep.subr.mxu0 0.0
        %779 = vmatpush1.msra.mxu0 0.0
        %780 = vmatprep.subr.mxu0 0.0
        %781 = vmatpush1.msra.mxu0 0.0
        %782 = vmatprep.subr.mxu0 0.0
        %783 = vmatpush1.msra.mxu0 0.0
        %784 = vmatprep.mubr.f32.mxu0 0.0
        %v785 = vand.u32 %v210, 4294901760
        %786 = vmatmul.mubr.f32.gmra.mrb[0].mxu0 %v785
        %v787 = vpop.f32.mrb[0].mxu0
        %v788 = vadd.f32 %v697, %v787
        %v789 = vpop.f32.mrb[0].mxu0
        %790 = vmatprep.mubr.f32.mxu0 0.0
        %v791 = vand.u32 %v213, 4294901760
        %792 = vmatmul.mubr.f32.gmra.mrb[0].mxu0 %v791
        %v793 = vpop.f32.mrb[0].mxu0
        %v794 = vadd.f32 %v703, %v793
        %v795 = vpop.f32.mrb[0].mxu0
        %796 = vmatprep.mubr.f32.mxu0 0.0
        %v797 = vand.u32 %v216, 4294901760
        %798 = vmatmul.mubr.f32.gmra.mrb[0].mxu0 %v797
        %v799 = vpop.f32.mrb[0].mxu0
        %v800 = vadd.f32 %v709, %v799
        %v801 = vpop.f32.mrb[0].mxu0
        %802 = vmatprep.mubr.f32.mxu0 0.0
        %v803 = vand.u32 %v219, 4294901760
        %804 = vmatmul.mubr.f32.gmra.mrb[0].mxu0 %v803
        %v805 = vpop.f32.mrb[0].mxu0
        %v806 = vadd.f32 %v715, %v805
        %v807 = vpop.f32.mrb[0].mxu0
        %808 = vdwg.mxu0
        %vm809 = vcmask 64512
        %810 = vst.msk [vmem:[%s201] sm:$0xff] %vm809, %v788
        %811 = vst.msk [vmem:[%s201 + $0x8] sm:$0xff] %vm809, %v794
        %812 = vst.msk [vmem:[%s201 + $0x10] sm:$0xff] %vm809, %v800
        %813 = vst.msk [vmem:[%s201 + $0x18] sm:$0xff] %vm809, %v806
        %818 = vrot.lane.b32.xlu0 %v788, 120
        %v819 = vpop.permute.xlu0 %818
        %820 = vrot.lane.b32.xlu0 %v794, 120
        %v821 = vpop.permute.xlu0 %820
        %822 = vrot.lane.b32.xlu0 %v800, 120
        %v823 = vpop.permute.xlu0 %822
        %824 = vrot.lane.b32.xlu0 %v806, 120
        %v825 = vpop.permute.xlu0 %824
        %s830 = scalar_lea.vmem %s201, 32
        %831 = vst.msk [vmem:[%s830] sm:$0xff] %vm809, %v819
        %832 = vst.msk [vmem:[%s830 + $0x8] sm:$0xff] %vm809, %v821
        %833 = vst.msk [vmem:[%s830 + $0x10] sm:$0xff] %vm809, %v823
        %834 = vst.msk [vmem:[%s830 + $0x18] sm:$0xff] %vm809, %v825
        %v835 = vld [vmem:[%s170] sm:$0xff]
        %v836 = vld [vmem:[%s170 + $0x8] sm:$0xff]
        %v837 = vld [vmem:[%s170 + $0x10] sm:$0xff]
        %v838 = vld [vmem:[%s170 + $0x18] sm:$0xff]
        %843 = vrot.lane.b32.xlu0 %v835, 112
        %v844 = vpop.permute.xlu0 %843
        %845 = vrot.lane.b32.xlu0 %v836, 112
        %v846 = vpop.permute.xlu0 %845
        %847 = vrot.lane.b32.xlu0 %v837, 112
        %v848 = vpop.permute.xlu0 %847
        %849 = vrot.lane.b32.xlu0 %v838, 112
        %v850 = vpop.permute.xlu0 %849
        %v851 = vsel %vm208, %v844, 0
        %v853 = vsel %vm208, %v846, 0
        %v855 = vsel %vm208, %v848, 0
        %v857 = vsel %vm208, %v850, 0
        %859 = vmatprep.subr.mxu0 0.0
        %v860 = vand.u32 %v202, 4294901760
        %861 = vmatpush1.msra.mxu0 %v860
        %862 = vmatprep.subr.mxu0 0.0
        %v863 = vand.u32 %v203, 4294901760
        %864 = vmatpush1.msra.mxu0 %v863
        %865 = vmatprep.subr.mxu0 0.0
        %866 = vmatpush1.msra.mxu0 0.0
        %867 = vmatprep.subr.mxu0 0.0
        %868 = vmatpush1.msra.mxu0 0.0
        %869 = vmatprep.subr.mxu0 0.0
        %870 = vmatpush1.msra.mxu0 0.0
        %871 = vmatprep.subr.mxu0 0.0
        %872 = vmatpush1.msra.mxu0 0.0
        %873 = vmatprep.subr.mxu0 0.0
        %874 = vmatpush1.msra.mxu0 0.0
        %875 = vmatprep.subr.mxu0 0.0
        %876 = vmatpush1.msra.mxu0 0.0
        %877 = vmatprep.subr.mxu0 0.0
        %878 = vmatpush1.msra.mxu0 0.0
        %879 = vmatprep.subr.mxu0 0.0
        %880 = vmatpush1.msra.mxu0 0.0
        %881 = vmatprep.subr.mxu0 0.0
        %882 = vmatpush1.msra.mxu0 0.0
        %883 = vmatprep.subr.mxu0 0.0
        %884 = vmatpush1.msra.mxu0 0.0
        %885 = vmatprep.subr.mxu0 0.0
        %886 = vmatpush1.msra.mxu0 0.0
        %887 = vmatprep.subr.mxu0 0.0
        %888 = vmatpush1.msra.mxu0 0.0
        %889 = vmatprep.subr.mxu0 0.0
        %890 = vmatpush1.msra.mxu0 0.0
        %891 = vmatprep.subr.mxu0 0.0
        %892 = vmatpush1.msra.mxu0 0.0
        %893 = vmatprep.subr.mxu0 0.0
        %894 = vmatpush1.msra.mxu0 0.0
        %895 = vmatprep.subr.mxu0 0.0
        %896 = vmatpush1.msra.mxu0 0.0
        %897 = vmatprep.subr.mxu0 0.0
        %898 = vmatpush1.msra.mxu0 0.0
        %899 = vmatprep.subr.mxu0 0.0
        %900 = vmatpush1.msra.mxu0 0.0
        %901 = vmatprep.subr.mxu0 0.0
        %902 = vmatpush1.msra.mxu0 0.0
        %903 = vmatprep.subr.mxu0 0.0
        %904 = vmatpush1.msra.mxu0 0.0
        %905 = vmatprep.subr.mxu0 0.0
        %906 = vmatpush1.msra.mxu0 0.0
        %907 = vmatprep.subr.mxu0 0.0
        %908 = vmatpush1.msra.mxu0 0.0
        %909 = vmatprep.subr.mxu0 0.0
        %910 = vmatpush1.msra.mxu0 0.0
        %911 = vmatprep.subr.mxu0 0.0
        %912 = vmatpush1.msra.mxu0 0.0
        %913 = vmatprep.subr.mxu0 0.0
        %914 = vmatpush1.msra.mxu0 0.0
        %915 = vmatprep.subr.mxu0 0.0
        %916 = vmatpush1.msra.mxu0 0.0
        %917 = vmatprep.subr.mxu0 0.0
        %918 = vmatpush1.msra.mxu0 0.0
        %919 = vmatprep.subr.mxu0 0.0
        %920 = vmatpush1.msra.mxu0 0.0
        %921 = vmatprep.subr.mxu0 0.0
        %922 = vmatpush1.msra.mxu0 0.0
        %923 = vmatprep.subr.mxu0 0.0
        %924 = vmatpush1.msra.mxu0 0.0
        %925 = vmatprep.mubr.f32.mxu0 0.0
        %v926 = vand.u32 %v851, 4294901760
        %v927 = vsub.f32 %v851, %v926
        %v928 = vand.u32 %v927, 4294901760
        %v929 = vsub.f32 %v927, %v928
        %v930 = vand.u32 %v929, 4294901760
        %931 = vmatmul.mubr.f32.gmra.mrb[0].mxu0 %v930
        %v932 = vpop.f32.mrb[0].mxu0
        %v933 = vadd.f32 0.0, %v932
        %v934 = vpop.f32.mrb[0].mxu0
        %935 = vmatprep.mubr.f32.mxu0 0.0
        %v936 = vand.u32 %v853, 4294901760
        %v937 = vsub.f32 %v853, %v936
        %v938 = vand.u32 %v937, 4294901760
        %v939 = vsub.f32 %v937, %v938
        %v940 = vand.u32 %v939, 4294901760
        %941 = vmatmul.mubr.f32.gmra.mrb[0].mxu0 %v940
        %v942 = vpop.f32.mrb[0].mxu0
        %v943 = vadd.f32 0.0, %v942
        %v944 = vpop.f32.mrb[0].mxu0
        %945 = vmatprep.mubr.f32.mxu0 0.0
        %v946 = vand.u32 %v855, 4294901760
        %v947 = vsub.f32 %v855, %v946
        %v948 = vand.u32 %v947, 4294901760
        %v949 = vsub.f32 %v947, %v948
        %v950 = vand.u32 %v949, 4294901760
        %951 = vmatmul.mubr.f32.gmra.mrb[0].mxu0 %v950
        %v952 = vpop.f32.mrb[0].mxu0
        %v953 = vadd.f32 0.0, %v952
        %v954 = vpop.f32.mrb[0].mxu0
        %955 = vmatprep.mubr.f32.mxu0 0.0
        %v956 = vand.u32 %v857, 4294901760
        %v957 = vsub.f32 %v857, %v956
        %v958 = vand.u32 %v957, 4294901760
        %v959 = vsub.f32 %v957, %v958
        %v960 = vand.u32 %v959, 4294901760
        %961 = vmatmul.mubr.f32.gmra.mrb[0].mxu0 %v960
        %v962 = vpop.f32.mrb[0].mxu0
        %v963 = vadd.f32 0.0, %v962
        %v964 = vpop.f32.mrb[0].mxu0
        %965 = vdwg.mxu0
        %966 = vmatprep.subr.mxu0 0.0
        %v967 = vand.u32 %v202, 4294901760
        %v968 = vsub.f32 %v202, %v967
        %v969 = vand.u32 %v968, 4294901760
        %v970 = vsub.f32 %v968, %v969
        %v971 = vand.u32 %v970, 4294901760
        %972 = vmatpush1.msra.mxu0 %v971
        %973 = vmatprep.subr.mxu0 0.0
        %v974 = vand.u32 %v203, 4294901760
        %v975 = vsub.f32 %v203, %v974
        %v976 = vand.u32 %v975, 4294901760
        %v977 = vsub.f32 %v975, %v976
        %v978 = vand.u32 %v977, 4294901760
        %979 = vmatpush1.msra.mxu0 %v978
        %980 = vmatprep.subr.mxu0 0.0
        %981 = vmatpush1.msra.mxu0 0.0
        %982 = vmatprep.subr.mxu0 0.0
        %983 = vmatpush1.msra.mxu0 0.0
        %984 = vmatprep.subr.mxu0 0.0
        %985 = vmatpush1.msra.mxu0 0.0
        %986 = vmatprep.subr.mxu0 0.0
        %987 = vmatpush1.msra.mxu0 0.0
        %988 = vmatprep.subr.mxu0 0.0
        %989 = vmatpush1.msra.mxu0 0.0
        %990 = vmatprep.subr.mxu0 0.0
        %991 = vmatpush1.msra.mxu0 0.0
        %992 = vmatprep.subr.mxu0 0.0
        %993 = vmatpush1.msra.mxu0 0.0
        %994 = vmatprep.subr.mxu0 0.0
        %995 = vmatpush1.msra.mxu0 0.0
        %996 = vmatprep.subr.mxu0 0.0
        %997 = vmatpush1.msra.mxu0 0.0
        %998 = vmatprep.subr.mxu0 0.0
        %999 = vmatpush1.msra.mxu0 0.0
        %1000 = vmatprep.subr.mxu0 0.0
        %1001 = vmatpush1.msra.mxu0 0.0
        %1002 = vmatprep.subr.mxu0 0.0
        %1003 = vmatpush1.msra.mxu0 0.0
        %1004 = vmatprep.subr.mxu0 0.0
        %1005 = vmatpush1.msra.mxu0 0.0
        %1006 = vmatprep.subr.mxu0 0.0
        %1007 = vmatpush1.msra.mxu0 0.0
        %1008 = vmatprep.subr.mxu0 0.0
        %1009 = vmatpush1.msra.mxu0 0.0
        %1010 = vmatprep.subr.mxu0 0.0
        %1011 = vmatpush1.msra.mxu0 0.0
        %1012 = vmatprep.subr.mxu0 0.0
        %1013 = vmatpush1.msra.mxu0 0.0
        %1014 = vmatprep.subr.mxu0 0.0
        %1015 = vmatpush1.msra.mxu0 0.0
        %1016 = vmatprep.subr.mxu0 0.0
        %1017 = vmatpush1.msra.mxu0 0.0
        %1018 = vmatprep.subr.mxu0 0.0
        %1019 = vmatpush1.msra.mxu0 0.0
        %1020 = vmatprep.subr.mxu0 0.0
        %1021 = vmatpush1.msra.mxu0 0.0
        %1022 = vmatprep.subr.mxu0 0.0
        %1023 = vmatpush1.msra.mxu0 0.0
        %1024 = vmatprep.subr.mxu0 0.0
        %1025 = vmatpush1.msra.mxu0 0.0
        %1026 = vmatprep.subr.mxu0 0.0
        %1027 = vmatpush1.msra.mxu0 0.0
        %1028 = vmatprep.subr.mxu0 0.0
        %1029 = vmatpush1.msra.mxu0 0.0
        %1030 = vmatprep.subr.mxu0 0.0
        %1031 = vmatpush1.msra.mxu0 0.0
        %1032 = vmatprep.subr.mxu0 0.0
        %1033 = vmatpush1.msra.mxu0 0.0
        %1034 = vmatprep.subr.mxu0 0.0
        %1035 = vmatpush1.msra.mxu0 0.0
        %1036 = vmatprep.subr.mxu0 0.0
        %1037 = vmatpush1.msra.mxu0 0.0
        %1038 = vmatprep.subr.mxu0 0.0
        %1039 = vmatpush1.msra.mxu0 0.0
        %1040 = vmatprep.mubr.f32.mxu0 0.0
        %v1041 = vand.u32 %v851, 4294901760
        %1042 = vmatmul.mubr.f32.gmra.mrb[0].mxu0 %v1041
        %v1043 = vpop.f32.mrb[0].mxu0
        %v1044 = vadd.f32 %v933, %v1043
        %v1045 = vpop.f32.mrb[0].mxu0
        %1046 = vmatprep.mubr.f32.mxu0 0.0
        %v1047 = vand.u32 %v853, 4294901760
        %1048 = vmatmul.mubr.f32.gmra.mrb[0].mxu0 %v1047
        %v1049 = vpop.f32.mrb[0].mxu0
        %v1050 = vadd.f32 %v943, %v1049
        %v1051 = vpop.f32.mrb[0].mxu0
        %1052 = vmatprep.mubr.f32.mxu0 0.0
        %v1053 = vand.u32 %v855, 4294901760
        %1054 = vmatmul.mubr.f32.gmra.mrb[0].mxu0 %v1053
        %v1055 = vpop.f32.mrb[0].mxu0
        %v1056 = vadd.f32 %v953, %v1055
        %v1057 = vpop.f32.mrb[0].mxu0
        %1058 = vmatprep.mubr.f32.mxu0 0.0
        %v1059 = vand.u32 %v857, 4294901760
        %1060 = vmatmul.mubr.f32.gmra.mrb[0].mxu0 %v1059
        %v1061 = vpop.f32.mrb[0].mxu0
        %v1062 = vadd.f32 %v963, %v1061
        %v1063 = vpop.f32.mrb[0].mxu0
        %1064 = vdwg.mxu0
        %1065 = vmatprep.subr.mxu0 0.0
        %v1066 = vand.u32 %v202, 4294901760
        %v1067 = vsub.f32 %v202, %v1066
        %1068 = vmatpush1.msra.mxu0 %v1067
        %1069 = vmatprep.subr.mxu0 0.0
        %v1070 = vand.u32 %v203, 4294901760
        %v1071 = vsub.f32 %v203, %v1070
        %1072 = vmatpush1.msra.mxu0 %v1071
        %1073 = vmatprep.subr.mxu0 0.0
        %1074 = vmatpush1.msra.mxu0 0.0
        %1075 = vmatprep.subr.mxu0 0.0
        %1076 = vmatpush1.msra.mxu0 0.0
        %1077 = vmatprep.subr.mxu0 0.0
        %1078 = vmatpush1.msra.mxu0 0.0
        %1079 = vmatprep.subr.mxu0 0.0
        %1080 = vmatpush1.msra.mxu0 0.0
        %1081 = vmatprep.subr.mxu0 0.0
        %1082 = vmatpush1.msra.mxu0 0.0
        %1083 = vmatprep.subr.mxu0 0.0
        %1084 = vmatpush1.msra.mxu0 0.0
        %1085 = vmatprep.subr.mxu0 0.0
        %1086 = vmatpush1.msra.mxu0 0.0
        %1087 = vmatprep.subr.mxu0 0.0
        %1088 = vmatpush1.msra.mxu0 0.0
        %1089 = vmatprep.subr.mxu0 0.0
        %1090 = vmatpush1.msra.mxu0 0.0
        %1091 = vmatprep.subr.mxu0 0.0
        %1092 = vmatpush1.msra.mxu0 0.0
        %1093 = vmatprep.subr.mxu0 0.0
        %1094 = vmatpush1.msra.mxu0 0.0
        %1095 = vmatprep.subr.mxu0 0.0
        %1096 = vmatpush1.msra.mxu0 0.0
        %1097 = vmatprep.subr.mxu0 0.0
        %1098 = vmatpush1.msra.mxu0 0.0
        %1099 = vmatprep.subr.mxu0 0.0
        %1100 = vmatpush1.msra.mxu0 0.0
        %1101 = vmatprep.subr.mxu0 0.0
        %1102 = vmatpush1.msra.mxu0 0.0
        %1103 = vmatprep.subr.mxu0 0.0
        %1104 = vmatpush1.msra.mxu0 0.0
        %1105 = vmatprep.subr.mxu0 0.0
        %1106 = vmatpush1.msra.mxu0 0.0
        %1107 = vmatprep.subr.mxu0 0.0
        %1108 = vmatpush1.msra.mxu0 0.0
        %1109 = vmatprep.subr.mxu0 0.0
        %1110 = vmatpush1.msra.mxu0 0.0
        %1111 = vmatprep.subr.mxu0 0.0
        %1112 = vmatpush1.msra.mxu0 0.0
        %1113 = vmatprep.subr.mxu0 0.0
        %1114 = vmatpush1.msra.mxu0 0.0
        %1115 = vmatprep.subr.mxu0 0.0
        %1116 = vmatpush1.msra.mxu0 0.0
        %1117 = vmatprep.subr.mxu0 0.0
        %1118 = vmatpush1.msra.mxu0 0.0
        %1119 = vmatprep.subr.mxu0 0.0
        %1120 = vmatpush1.msra.mxu0 0.0
        %1121 = vmatprep.subr.mxu0 0.0
        %1122 = vmatpush1.msra.mxu0 0.0
        %1123 = vmatprep.subr.mxu0 0.0
        %1124 = vmatpush1.msra.mxu0 0.0
        %1125 = vmatprep.subr.mxu0 0.0
        %1126 = vmatpush1.msra.mxu0 0.0
        %1127 = vmatprep.subr.mxu0 0.0
        %1128 = vmatpush1.msra.mxu0 0.0
        %1129 = vmatprep.subr.mxu0 0.0
        %1130 = vmatpush1.msra.mxu0 0.0
        %1131 = vmatprep.subr.mxu0 0.0
        %1132 = vmatpush1.msra.mxu0 0.0
        %1133 = vmatprep.mubr.f32.mxu0 0.0
        %v1134 = vand.u32 %v851, 4294901760
        %v1135 = vsub.f32 %v851, %v1134
        %1136 = vmatmul.mubr.f32.gmra.mrb[0].mxu0 %v1135
        %v1137 = vpop.f32.mrb[0].mxu0
        %v1138 = vadd.f32 %v1044, %v1137
        %v1139 = vpop.f32.mrb[0].mxu0
        %1140 = vmatprep.mubr.f32.mxu0 0.0
        %v1141 = vand.u32 %v853, 4294901760
        %v1142 = vsub.f32 %v853, %v1141
        %1143 = vmatmul.mubr.f32.gmra.mrb[0].mxu0 %v1142
        %v1144 = vpop.f32.mrb[0].mxu0
        %v1145 = vadd.f32 %v1050, %v1144
        %v1146 = vpop.f32.mrb[0].mxu0
        %1147 = vmatprep.mubr.f32.mxu0 0.0
        %v1148 = vand.u32 %v855, 4294901760
        %v1149 = vsub.f32 %v855, %v1148
        %1150 = vmatmul.mubr.f32.gmra.mrb[0].mxu0 %v1149
        %v1151 = vpop.f32.mrb[0].mxu0
        %v1152 = vadd.f32 %v1056, %v1151
        %v1153 = vpop.f32.mrb[0].mxu0
        %1154 = vmatprep.mubr.f32.mxu0 0.0
        %v1155 = vand.u32 %v857, 4294901760
        %v1156 = vsub.f32 %v857, %v1155
        %1157 = vmatmul.mubr.f32.gmra.mrb[0].mxu0 %v1156
        %v1158 = vpop.f32.mrb[0].mxu0
        %v1159 = vadd.f32 %v1062, %v1158
        %v1160 = vpop.f32.mrb[0].mxu0
        %1161 = vdwg.mxu0
        %1162 = vmatprep.subr.mxu0 0.0
        %v1163 = vand.u32 %v202, 4294901760
        %1164 = vmatpush1.msra.mxu0 %v1163
        %1165 = vmatprep.subr.mxu0 0.0
        %v1166 = vand.u32 %v203, 4294901760
        %1167 = vmatpush1.msra.mxu0 %v1166
        %1168 = vmatprep.subr.mxu0 0.0
        %1169 = vmatpush1.msra.mxu0 0.0
        %1170 = vmatprep.subr.mxu0 0.0
        %1171 = vmatpush1.msra.mxu0 0.0
        %1172 = vmatprep.subr.mxu0 0.0
        %1173 = vmatpush1.msra.mxu0 0.0
        %1174 = vmatprep.subr.mxu0 0.0
        %1175 = vmatpush1.msra.mxu0 0.0
        %1176 = vmatprep.subr.mxu0 0.0
        %1177 = vmatpush1.msra.mxu0 0.0
        %1178 = vmatprep.subr.mxu0 0.0
        %1179 = vmatpush1.msra.mxu0 0.0
        %1180 = vmatprep.subr.mxu0 0.0
        %1181 = vmatpush1.msra.mxu0 0.0
        %1182 = vmatprep.subr.mxu0 0.0
        %1183 = vmatpush1.msra.mxu0 0.0
        %1184 = vmatprep.subr.mxu0 0.0
        %1185 = vmatpush1.msra.mxu0 0.0
        %1186 = vmatprep.subr.mxu0 0.0
        %1187 = vmatpush1.msra.mxu0 0.0
        %1188 = vmatprep.subr.mxu0 0.0
        %1189 = vmatpush1.msra.mxu0 0.0
        %1190 = vmatprep.subr.mxu0 0.0
        %1191 = vmatpush1.msra.mxu0 0.0
        %1192 = vmatprep.subr.mxu0 0.0
        %1193 = vmatpush1.msra.mxu0 0.0
        %1194 = vmatprep.subr.mxu0 0.0
        %1195 = vmatpush1.msra.mxu0 0.0
        %1196 = vmatprep.subr.mxu0 0.0
        %1197 = vmatpush1.msra.mxu0 0.0
        %1198 = vmatprep.subr.mxu0 0.0
        %1199 = vmatpush1.msra.mxu0 0.0
        %1200 = vmatprep.subr.mxu0 0.0
        %1201 = vmatpush1.msra.mxu0 0.0
        %1202 = vmatprep.subr.mxu0 0.0
        %1203 = vmatpush1.msra.mxu0 0.0
        %1204 = vmatprep.subr.mxu0 0.0
        %1205 = vmatpush1.msra.mxu0 0.0
        %1206 = vmatprep.subr.mxu0 0.0
        %1207 = vmatpush1.msra.mxu0 0.0
        %1208 = vmatprep.subr.mxu0 0.0
        %1209 = vmatpush1.msra.mxu0 0.0
        %1210 = vmatprep.subr.mxu0 0.0
        %1211 = vmatpush1.msra.mxu0 0.0
        %1212 = vmatprep.subr.mxu0 0.0
        %1213 = vmatpush1.msra.mxu0 0.0
        %1214 = vmatprep.subr.mxu0 0.0
        %1215 = vmatpush1.msra.mxu0 0.0
        %1216 = vmatprep.subr.mxu0 0.0
        %1217 = vmatpush1.msra.mxu0 0.0
        %1218 = vmatprep.subr.mxu0 0.0
        %1219 = vmatpush1.msra.mxu0 0.0
        %1220 = vmatprep.subr.mxu0 0.0
        %1221 = vmatpush1.msra.mxu0 0.0
        %1222 = vmatprep.subr.mxu0 0.0
        %1223 = vmatpush1.msra.mxu0 0.0
        %1224 = vmatprep.subr.mxu0 0.0
        %1225 = vmatpush1.msra.mxu0 0.0
        %1226 = vmatprep.subr.mxu0 0.0
        %1227 = vmatpush1.msra.mxu0 0.0
        %1228 = vmatprep.mubr.f32.mxu0 0.0
        %v1229 = vand.u32 %v851, 4294901760
        %v1230 = vsub.f32 %v851, %v1229
        %v1231 = vand.u32 %v1230, 4294901760
        %1232 = vmatmul.mubr.f32.gmra.mrb[0].mxu0 %v1231
        %v1233 = vpop.f32.mrb[0].mxu0
        %v1234 = vadd.f32 %v1138, %v1233
        %v1235 = vpop.f32.mrb[0].mxu0
        %1236 = vmatprep.mubr.f32.mxu0 0.0
        %v1237 = vand.u32 %v853, 4294901760
        %v1238 = vsub.f32 %v853, %v1237
        %v1239 = vand.u32 %v1238, 4294901760
        %1240 = vmatmul.mubr.f32.gmra.mrb[0].mxu0 %v1239
        %v1241 = vpop.f32.mrb[0].mxu0
        %v1242 = vadd.f32 %v1145, %v1241
        %v1243 = vpop.f32.mrb[0].mxu0
        %1244 = vmatprep.mubr.f32.mxu0 0.0
        %v1245 = vand.u32 %v855, 4294901760
        %v1246 = vsub.f32 %v855, %v1245
        %v1247 = vand.u32 %v1246, 4294901760
        %1248 = vmatmul.mubr.f32.gmra.mrb[0].mxu0 %v1247
        %v1249 = vpop.f32.mrb[0].mxu0
        %v1250 = vadd.f32 %v1152, %v1249
        %v1251 = vpop.f32.mrb[0].mxu0
        %1252 = vmatprep.mubr.f32.mxu0 0.0
        %v1253 = vand.u32 %v857, 4294901760
        %v1254 = vsub.f32 %v857, %v1253
        %v1255 = vand.u32 %v1254, 4294901760
        %1256 = vmatmul.mubr.f32.gmra.mrb[0].mxu0 %v1255
        %v1257 = vpop.f32.mrb[0].mxu0
        %v1258 = vadd.f32 %v1159, %v1257
        %v1259 = vpop.f32.mrb[0].mxu0
        %1260 = vdwg.mxu0
        %1261 = vmatprep.subr.mxu0 0.0
        %v1262 = vand.u32 %v202, 4294901760
        %v1263 = vsub.f32 %v202, %v1262
        %v1264 = vand.u32 %v1263, 4294901760
        %1265 = vmatpush1.msra.mxu0 %v1264
        %1266 = vmatprep.subr.mxu0 0.0
        %v1267 = vand.u32 %v203, 4294901760
        %v1268 = vsub.f32 %v203, %v1267
        %v1269 = vand.u32 %v1268, 4294901760
        %1270 = vmatpush1.msra.mxu0 %v1269
        %1271 = vmatprep.subr.mxu0 0.0
        %1272 = vmatpush1.msra.mxu0 0.0
        %1273 = vmatprep.subr.mxu0 0.0
        %1274 = vmatpush1.msra.mxu0 0.0
        %1275 = vmatprep.subr.mxu0 0.0
        %1276 = vmatpush1.msra.mxu0 0.0
        %1277 = vmatprep.subr.mxu0 0.0
        %1278 = vmatpush1.msra.mxu0 0.0
        %1279 = vmatprep.subr.mxu0 0.0
        %1280 = vmatpush1.msra.mxu0 0.0
        %1281 = vmatprep.subr.mxu0 0.0
        %1282 = vmatpush1.msra.mxu0 0.0
        %1283 = vmatprep.subr.mxu0 0.0
        %1284 = vmatpush1.msra.mxu0 0.0
        %1285 = vmatprep.subr.mxu0 0.0
        %1286 = vmatpush1.msra.mxu0 0.0
        %1287 = vmatprep.subr.mxu0 0.0
        %1288 = vmatpush1.msra.mxu0 0.0
        %1289 = vmatprep.subr.mxu0 0.0
        %1290 = vmatpush1.msra.mxu0 0.0
        %1291 = vmatprep.subr.mxu0 0.0
        %1292 = vmatpush1.msra.mxu0 0.0
        %1293 = vmatprep.subr.mxu0 0.0
        %1294 = vmatpush1.msra.mxu0 0.0
        %1295 = vmatprep.subr.mxu0 0.0
        %1296 = vmatpush1.msra.mxu0 0.0
        %1297 = vmatprep.subr.mxu0 0.0
        %1298 = vmatpush1.msra.mxu0 0.0
        %1299 = vmatprep.subr.mxu0 0.0
        %1300 = vmatpush1.msra.mxu0 0.0
        %1301 = vmatprep.subr.mxu0 0.0
        %1302 = vmatpush1.msra.mxu0 0.0
        %1303 = vmatprep.subr.mxu0 0.0
        %1304 = vmatpush1.msra.mxu0 0.0
        %1305 = vmatprep.subr.mxu0 0.0
        %1306 = vmatpush1.msra.mxu0 0.0
        %1307 = vmatprep.subr.mxu0 0.0
        %1308 = vmatpush1.msra.mxu0 0.0
        %1309 = vmatprep.subr.mxu0 0.0
        %1310 = vmatpush1.msra.mxu0 0.0
        %1311 = vmatprep.subr.mxu0 0.0
        %1312 = vmatpush1.msra.mxu0 0.0
        %1313 = vmatprep.subr.mxu0 0.0
        %1314 = vmatpush1.msra.mxu0 0.0
        %1315 = vmatprep.subr.mxu0 0.0
        %1316 = vmatpush1.msra.mxu0 0.0
        %1317 = vmatprep.subr.mxu0 0.0
        %1318 = vmatpush1.msra.mxu0 0.0
        %1319 = vmatprep.subr.mxu0 0.0
        %1320 = vmatpush1.msra.mxu0 0.0
        %1321 = vmatprep.subr.mxu0 0.0
        %1322 = vmatpush1.msra.mxu0 0.0
        %1323 = vmatprep.subr.mxu0 0.0
        %1324 = vmatpush1.msra.mxu0 0.0
        %1325 = vmatprep.subr.mxu0 0.0
        %1326 = vmatpush1.msra.mxu0 0.0
        %1327 = vmatprep.subr.mxu0 0.0
        %1328 = vmatpush1.msra.mxu0 0.0
        %1329 = vmatprep.subr.mxu0 0.0
        %1330 = vmatpush1.msra.mxu0 0.0
        %1331 = vmatprep.mubr.f32.mxu0 0.0
        %v1332 = vand.u32 %v851, 4294901760
        %1333 = vmatmul.mubr.f32.gmra.mrb[0].mxu0 %v1332
        %v1334 = vpop.f32.mrb[0].mxu0
        %v1335 = vadd.f32 %v1234, %v1334
        %v1336 = vpop.f32.mrb[0].mxu0
        %1337 = vmatprep.mubr.f32.mxu0 0.0
        %v1338 = vand.u32 %v853, 4294901760
        %1339 = vmatmul.mubr.f32.gmra.mrb[0].mxu0 %v1338
        %v1340 = vpop.f32.mrb[0].mxu0
        %v1341 = vadd.f32 %v1242, %v1340
        %v1342 = vpop.f32.mrb[0].mxu0
        %1343 = vmatprep.mubr.f32.mxu0 0.0
        %v1344 = vand.u32 %v855, 4294901760
        %1345 = vmatmul.mubr.f32.gmra.mrb[0].mxu0 %v1344
        %v1346 = vpop.f32.mrb[0].mxu0
        %v1347 = vadd.f32 %v1250, %v1346
        %v1348 = vpop.f32.mrb[0].mxu0
        %1349 = vmatprep.mubr.f32.mxu0 0.0
        %v1350 = vand.u32 %v857, 4294901760
        %1351 = vmatmul.mubr.f32.gmra.mrb[0].mxu0 %v1350
        %v1352 = vpop.f32.mrb[0].mxu0
        %v1353 = vadd.f32 %v1258, %v1352
        %v1354 = vpop.f32.mrb[0].mxu0
        %1355 = vdwg.mxu0
        %1356 = vmatprep.subr.mxu0 0.0
        %v1357 = vand.u32 %v202, 4294901760
        %1358 = vmatpush1.msra.mxu0 %v1357
        %1359 = vmatprep.subr.mxu0 0.0
        %v1360 = vand.u32 %v203, 4294901760
        %1361 = vmatpush1.msra.mxu0 %v1360
        %1362 = vmatprep.subr.mxu0 0.0
        %1363 = vmatpush1.msra.mxu0 0.0
        %1364 = vmatprep.subr.mxu0 0.0
        %1365 = vmatpush1.msra.mxu0 0.0
        %1366 = vmatprep.subr.mxu0 0.0
        %1367 = vmatpush1.msra.mxu0 0.0
        %1368 = vmatprep.subr.mxu0 0.0
        %1369 = vmatpush1.msra.mxu0 0.0
        %1370 = vmatprep.subr.mxu0 0.0
        %1371 = vmatpush1.msra.mxu0 0.0
        %1372 = vmatprep.subr.mxu0 0.0
        %1373 = vmatpush1.msra.mxu0 0.0
        %1374 = vmatprep.subr.mxu0 0.0
        %1375 = vmatpush1.msra.mxu0 0.0
        %1376 = vmatprep.subr.mxu0 0.0
        %1377 = vmatpush1.msra.mxu0 0.0
        %1378 = vmatprep.subr.mxu0 0.0
        %1379 = vmatpush1.msra.mxu0 0.0
        %1380 = vmatprep.subr.mxu0 0.0
        %1381 = vmatpush1.msra.mxu0 0.0
        %1382 = vmatprep.subr.mxu0 0.0
        %1383 = vmatpush1.msra.mxu0 0.0
        %1384 = vmatprep.subr.mxu0 0.0
        %1385 = vmatpush1.msra.mxu0 0.0
        %1386 = vmatprep.subr.mxu0 0.0
        %1387 = vmatpush1.msra.mxu0 0.0
        %1388 = vmatprep.subr.mxu0 0.0
        %1389 = vmatpush1.msra.mxu0 0.0
        %1390 = vmatprep.subr.mxu0 0.0
        %1391 = vmatpush1.msra.mxu0 0.0
        %1392 = vmatprep.subr.mxu0 0.0
        %1393 = vmatpush1.msra.mxu0 0.0
        %1394 = vmatprep.subr.mxu0 0.0
        %1395 = vmatpush1.msra.mxu0 0.0
        %1396 = vmatprep.subr.mxu0 0.0
        %1397 = vmatpush1.msra.mxu0 0.0
        %1398 = vmatprep.subr.mxu0 0.0
        %1399 = vmatpush1.msra.mxu0 0.0
        %1400 = vmatprep.subr.mxu0 0.0
        %1401 = vmatpush1.msra.mxu0 0.0
        %1402 = vmatprep.subr.mxu0 0.0
        %1403 = vmatpush1.msra.mxu0 0.0
        %1404 = vmatprep.subr.mxu0 0.0
        %1405 = vmatpush1.msra.mxu0 0.0
        %1406 = vmatprep.subr.mxu0 0.0
        %1407 = vmatpush1.msra.mxu0 0.0
        %1408 = vmatprep.subr.mxu0 0.0
        %1409 = vmatpush1.msra.mxu0 0.0
        %1410 = vmatprep.subr.mxu0 0.0
        %1411 = vmatpush1.msra.mxu0 0.0
        %1412 = vmatprep.subr.mxu0 0.0
        %1413 = vmatpush1.msra.mxu0 0.0
        %1414 = vmatprep.subr.mxu0 0.0
        %1415 = vmatpush1.msra.mxu0 0.0
        %1416 = vmatprep.subr.mxu0 0.0
        %1417 = vmatpush1.msra.mxu0 0.0
        %1418 = vmatprep.subr.mxu0 0.0
        %1419 = vmatpush1.msra.mxu0 0.0
        %1420 = vmatprep.subr.mxu0 0.0
        %1421 = vmatpush1.msra.mxu0 0.0
        %1422 = vmatprep.mubr.f32.mxu0 0.0
        %v1423 = vand.u32 %v851, 4294901760
        %1424 = vmatmul.mubr.f32.gmra.mrb[0].mxu0 %v1423
        %v1425 = vpop.f32.mrb[0].mxu0
        %v1426 = vadd.f32 %v1335, %v1425
        %v1427 = vpop.f32.mrb[0].mxu0
        %1428 = vmatprep.mubr.f32.mxu0 0.0
        %v1429 = vand.u32 %v853, 4294901760
        %1430 = vmatmul.mubr.f32.gmra.mrb[0].mxu0 %v1429
        %v1431 = vpop.f32.mrb[0].mxu0
        %v1432 = vadd.f32 %v1341, %v1431
        %v1433 = vpop.f32.mrb[0].mxu0
        %1434 = vmatprep.mubr.f32.mxu0 0.0
        %v1435 = vand.u32 %v855, 4294901760
        %1436 = vmatmul.mubr.f32.gmra.mrb[0].mxu0 %v1435
        %v1437 = vpop.f32.mrb[0].mxu0
        %v1438 = vadd.f32 %v1347, %v1437
        %v1439 = vpop.f32.mrb[0].mxu0
        %1440 = vmatprep.mubr.f32.mxu0 0.0
        %v1441 = vand.u32 %v857, 4294901760
        %1442 = vmatmul.mubr.f32.gmra.mrb[0].mxu0 %v1441
        %v1443 = vpop.f32.mrb[0].mxu0
        %v1444 = vadd.f32 %v1353, %v1443
        %v1445 = vpop.f32.mrb[0].mxu0
        %1446 = vdwg.mxu0
        %s1447 = scalar_lea.vmem %s201, 64
        %1448 = vst.msk [vmem:[%s1447] sm:$0xff] %vm809, %v1426
        %1449 = vst.msk [vmem:[%s1447 + $0x8] sm:$0xff] %vm809, %v1432
        %1450 = vst.msk [vmem:[%s1447 + $0x10] sm:$0xff] %vm809, %v1438
        %1451 = vst.msk [vmem:[%s1447 + $0x18] sm:$0xff] %vm809, %v1444
        %1456 = vrot.lane.b32.xlu0 %v1426, 120
        %v1457 = vpop.permute.xlu0 %1456
        %1458 = vrot.lane.b32.xlu0 %v1432, 120
        %v1459 = vpop.permute.xlu0 %1458
        %1460 = vrot.lane.b32.xlu0 %v1438, 120
        %v1461 = vpop.permute.xlu0 %1460
        %1462 = vrot.lane.b32.xlu0 %v1444, 120
        %v1463 = vpop.permute.xlu0 %1462
        %s1468 = scalar_lea.vmem %s201, 96
        %1469 = vst.msk [vmem:[%s1468] sm:$0xff] %vm809, %v1457
        %1470 = vst.msk [vmem:[%s1468 + $0x8] sm:$0xff] %vm809, %v1459
        %1471 = vst.msk [vmem:[%s1468 + $0x10] sm:$0xff] %vm809, %v1461
        %1472 = vst.msk [vmem:[%s1468 + $0x18] sm:$0xff] %vm809, %v1463
        %p1473 = scmp.lt.s32.totalorder %s21, 1
        %s1474 = scalar_select %p1473, %s21, 1
        %p1475 = scmp.lt.s32.totalorder %s22, 0
        %s1476 = scalar_select %p1475, %s22, 0
        %s1477 = smul.addr %s1474, 16
        %s1478 = sadd.s32 %s1476, %s1477
        %s1479 = smul.addr %s1478, 8
        %s1480 = scalar_lea.vmem %s2, %s1479
        // Predicated region
        $region37: #{tpu_custom_call.1} parent=27 // pred_check
          %p1481 = pneg %p98
        $region38: #{tpu_custom_call.1} parent=27 // pred_check_branch
          %1483 = sbr.rel (%p1481) target = $region40
        $region39: #{tpu_custom_call.1} parent=27 // pred_region
          _
        $region40: #{tpu_custom_call.1} parent=27 // pred_fallthru
          _
      $region28: #{tpu_custom_call.1} parent=5 // pred_fallthru
        _
      %p1484 = scmp.le.s32.totalorder 2, %s12
      // Predicated region
      $region41: #{tpu_custom_call.1} parent=5 // pred_check
        %p1485 = pneg %p1484
      $region42: #{tpu_custom_call.1} parent=5 // pred_check_branch
        %1487 = sbr.rel (%p1485) target = $region44
      $region43: #{tpu_custom_call.1} parent=5 // pred_region
        %s1488 = ssub.s32 %s12, 2
        // Predicated region
        $region45: #{tpu_custom_call.1} parent=43 // pred_check
          %p1489 = pneg %p104
        $region46: #{tpu_custom_call.1} parent=43 // pred_check_branch
          %1491 = sbr.rel (%p1489) target = $region48
        $region47: #{tpu_custom_call.1} parent=43 // pred_region
          %p1492 = scmp.lt.s32.totalorder %s23, 1
          %s1493 = scalar_select %p1492, %s23, 1
          %p1494 = scmp.lt.s32.totalorder %s24, 0
          %s1495 = scalar_select %p1494, %s24, 0
          %s1496 = smul.addr %s1493, 16
          %s1497 = sadd.s32 %s1495, %s1496
          %s1498 = smul.addr %s1497, 8
          %s1499 = scalar_lea.vmem %s2, %s1498
        $region48: #{tpu_custom_call.1} parent=43 // pred_fallthru
          _
      $region44: #{tpu_custom_call.1} parent=5 // pred_fallthru
        _
    $region6: #{tpu_custom_call.1} parent=1 // loop_footer
      %s16 = sadd.s32 1, %s12
    $region7: #{tpu_custom_call.1} parent=1 // loop_footer_branch
      %11 = sbr.rel target = $region3
    $region8: #{tpu_custom_call.1} parent=1 // loop_exit
      _
    %1500 = vsyncpa [#allocation3], 1
    %s1501 = scalar_lea.sflag [#allocation3], 1
    %1502 = vsyncpa %s1501, 1
    %1503 = vsyncpa [#allocation5], 1
    %s1504 = scalar_lea.sflag [#allocation5], 1
    %1505 = vsyncpa %s1504, 1

</llo_original>
